<compile_context>
chip_gen: v6e
topology: v6e:2x2x1
jax: 0.10.0
libtpu: 0.0.40
codegen_flags: <defaults>
</compile_context>

<pallas_src>
import functools

import jax
import jax.numpy as jnp
from jax import lax
from jax.experimental import pallas as pl
from jax.experimental.pallas import tpu as pltpu


_ON_TPU = jax.default_backend() == "tpu"
# bf16 feeds the MXU at full rate on TPU; other backends (e.g. the CPU
# interpreter used for correctness checks) cannot execute bf16 x bf16 -> f32
# dots, so fall back to f32 end-to-end there.
_COMPUTE_DTYPE = jnp.bfloat16 if _ON_TPU else jnp.float32


def _round_up(x, m):
    return ((x + m - 1) // m) * m


def _vmem_capacity_bytes():
    try:
        cap = int(pltpu.get_tpu_info().vmem_capacity_bytes)
        if cap > 0:
            return cap
    except Exception:
        pass
    return 64 * 1024 * 1024          # conservative default (v7x per-core VMEM)


def _vmem_limit_bytes():
    # v5e/v6e (128 MiB physical): 64 MiB scoped limit; v7x (64 MiB): ~48 MiB.
    cap = _vmem_capacity_bytes()
    return int(min(64 * 1024 * 1024, int(cap * 0.75)))


def _choose_tile(bsp, x_rows, c_out, w_shapes, itemsize, vmem_limit,
                 min_steps=2):
    """Largest lane tile (multiple of 128) dividing bsp that fits ~80% of the
    scoped-VMEM limit with double-buffered input/output blocks.  min_steps=2
    keeps dimension_semantics=("parallel",) able to spread the grid over
    v7x's two TensorCores; on single-TC v5e/v6e it costs at most one extra
    ~0.35us grid step."""
    if bsp <= 128 or bsp % 128 != 0:
        return bsp

    budget = int(vmem_limit * 0.8)
    w_bytes = sum(2 * _round_up(ro, 16) * _round_up(rc, 128) * itemsize
                  for ro, rc in w_shapes)

    def need(ts):
        x_blk = _round_up(x_rows, 16) * ts * itemsize
        o_blk = _round_up(c_out, 8) * ts * 4
        return 2 * (x_blk + o_blk) + w_bytes     # double-buffered in/out

    cap_ts = bsp
    if bsp // 128 >= min_steps:
        cap_ts = max(128, (bsp // min_steps) // 128 * 128)
    ts = cap_ts
    while ts > 128 and (bsp % ts != 0 or need(ts) > budget):
        ts -= 128
    return ts


# ----------------------------------------------------------------------------
# Pallas kernel: shared MLP (block-diagonal channel matmul over all K
# neighbors at once) + ReLU + max over the K row groups.
# ----------------------------------------------------------------------------
def _mlp_maxpool_kernel(x_ref, *rest):
    o_ref = rest[-1]
    wb = rest[:-1]
    num_layers = len(wb) // 2
    c_out, _ = o_ref.shape

    h = x_ref[...]                                   # (K*C_in, TS)
    for l in range(num_layers):
        w = wb[2 * l][...]                           # (K*C_out_l, K*C_in_l)
        b = wb[2 * l + 1][...]                       # (K*C_out_l, 1) f32
        # Single big matmul per layer: contraction = K*C_in, M = K*C_out.
        h = jnp.dot(w, h, preferred_element_type=jnp.float32) + b
        h = jnp.maximum(h, 0.0)                      # ReLU in f32 (VPU)
        if l + 1 < num_layers:
            h = h.astype(w.dtype)                    # narrow before next MXU feed

    # Max-pool over neighbors: K-1 elementwise maxes over sublane-aligned
    # row groups (C_out is a multiple of 8, so slices are aligned views).
    k_nbrs = h.shape[0] // c_out
    acc = h[:c_out, :]
    for k in range(1, k_nbrs):
        acc = jnp.maximum(acc, h[k * c_out:(k + 1) * c_out, :])
    # TODO(synk): on real HW emit bf16 output to halve HBM writeback.
    o_ref[...] = acc


def mlp_maxpool(x_t, weights_bd, biases_bd, c_out):
    """x_t: (K*C_in, BSp) -> (C_out, BSp) f32."""
    x_rows, bsp = x_t.shape
    vmem_limit = _vmem_limit_bytes()
    ts = _choose_tile(bsp, x_rows, c_out, [w.shape for w in weights_bd],
                      jnp.dtype(_COMPUTE_DTYPE).itemsize, vmem_limit)
    grid = (bsp // ts,)

    in_specs = [pl.BlockSpec((x_rows, ts), lambda i: (0, i))]
    args = [x_t]
    # TODO(synk): weights/biases have a constant index_map; single-buffer them
    # (pipeline_mode=pl.Buffered(1)) once that path is verified on all gens.
    for w, b in zip(weights_bd, biases_bd):
        ro, rc = w.shape
        in_specs.append(pl.BlockSpec((ro, rc), lambda i: (0, 0)))
        in_specs.append(pl.BlockSpec((ro, 1), lambda i: (0, 0)))
        args.append(w)
        args.append(b)

    return pl.pallas_call(
        _mlp_maxpool_kernel,
        out_shape=jax.ShapeDtypeStruct((c_out, bsp), jnp.float32),
        grid=grid,
        in_specs=in_specs,
        out_specs=pl.BlockSpec((c_out, ts), lambda i: (0, i)),
        compiler_params=pltpu.CompilerParams(
            dimension_semantics=("parallel",),
            vmem_limit_bytes=vmem_limit),
    )(*args)


def _expand_params(ws, bs, k):
    """Per-layer W stored as (C_in, C_out) -> block-diagonal kron(I_K, W^T)
    of shape (K*C_out, K*C_in) and K-tiled bias (K*C_out, 1)."""
    eye = jnp.eye(k, dtype=jnp.float32)
    wbd, bbd = [], []
    for w, b in zip(ws, bs):
        wt = w.T                                              # (C_out, C_in)
        wbd.append(jnp.kron(eye, wt).astype(_COMPUTE_DTYPE))
        bbd.append(jnp.tile(b.reshape(-1, 1), (k, 1)).astype(jnp.float32))
    return wbd, bbd


# ----------------------------------------------------------------------------
# Glue ops in plain JAX (data-dependent / sequential selection)
# ----------------------------------------------------------------------------
# TODO(synk): furthest-point sampling is inherently sequential; it stays in JAX.
def furthest_point_sample(xyz, npoint):
    """xyz: (B, N, 3) -> indices (B, npoint) int32. Matches pointnet2 semantics."""
    b, n, _ = xyz.shape

    def body(i, carry):
        dists, idxs, last = carry
        last_xyz = jnp.take_along_axis(xyz, last[:, None, None], axis=1)  # (B,1,3)
        d = jnp.sum((xyz - last_xyz) ** 2, axis=-1)                       # (B,N)
        dists = jnp.minimum(dists, d)
        nxt = jnp.argmax(dists, axis=-1).astype(jnp.int32)
        idxs = idxs.at[:, i].set(nxt)
        return dists, idxs, nxt

    idxs = jnp.zeros((b, npoint), jnp.int32)      # first index = 0
    dists = jnp.full((b, n), 1e10, jnp.float32)
    last = jnp.zeros((b,), jnp.int32)
    _, idxs, _ = lax.fori_loop(1, npoint, body, (dists, idxs, last))
    return idxs


def ball_query(radius, nsample, xyz, new_xyz):
    """xyz: (B,N,3), new_xyz: (B,S,3) -> idx (B,S,nsample) int32.
    First `nsample` in-radius indices in point order; missing slots filled with
    the first in-radius index (pointnet2 CUDA semantics)."""
    n = xyz.shape[1]
    d2 = jnp.sum((new_xyz[:, :, None, :] - xyz[:, None, :, :]) ** 2, axis=-1)
    mask = d2 < (radius * radius)                                   # (B,S,N)
    key = jnp.where(mask, jnp.arange(n, dtype=jnp.int32)[None, None, :],
                    jnp.int32(n))
    neg_top, _ = lax.top_k(-key, nsample)                           # descending
    sel = -neg_top                                                  # ascending
    first = jnp.where(sel[..., :1] < n, sel[..., :1], 0)
    return jnp.where(sel < n, sel, first).astype(jnp.int32)


def gather_points(points, idx):
    """points: (B, N, C); idx: (B, ...) -> (B, ..., C)."""
    return jax.vmap(lambda p, i: p[i])(points, idx)


# ----------------------------------------------------------------------------
# PointnetSAModuleMSG forward (use_xyz=True, bn=False)
# ----------------------------------------------------------------------------
def sa_msg_forward(xyz, features, npoint, radii, nsamples, scale_params):
    """xyz: (B,N,3); features: (B,N,Cf) or None -> (new_xyz (B,S,3), feats (B,S,sumCout))."""
    b = xyz.shape[0]
    fps_idx = furthest_point_sample(xyz, npoint)
    new_xyz = gather_points(xyz, fps_idx)                     # (B, S, 3)
    n_cent = b * npoint
    bsp = _round_up(n_cent, 128)                              # lane-dense pad

    feats_out = []
    # TODO(synk): fuse all MSG scales into one pallas_call (stack per-scale
    # K_s*C_in_s rows, block-diagonalize weights across scales) and pull the
    # neighbor gather into the kernel via scalar-prefetched indices + manual
    # DMA to remove the XLA-side transpose of the K-expanded tensor.
    for radius, nsample, (ws, bias) in zip(radii, nsamples, scale_params):
        idx = ball_query(radius, nsample, xyz, new_xyz)       # (B, S, K)
        grouped_xyz = gather_points(xyz, idx) - new_xyz[:, :, None, :]
        if features is not None:
            grouped = jnp.concatenate(
                [grouped_xyz, gather_points(features, idx)], axis=-1)
        else:
            grouped = grouped_xyz                             # (B,S,K,C)
        c_in = grouped.shape[-1]

        # (K*C_in, B*S): K neighbors stacked on the contraction/sublane axis
        # (row = k*C_in + c), centroids lane-dense, padded to BSp columns.
        gt = grouped.reshape(n_cent, nsample * c_in).T
        if bsp != n_cent:
            gt = jnp.pad(gt, ((0, 0), (0, bsp - n_cent)))
        gt = gt.astype(_COMPUTE_DTYPE)

        wbd, bbd = _expand_params(ws, bias, nsample)
        c_out = ws[-1].shape[1]
        out = mlp_maxpool(gt, wbd, bbd, c_out)                # (C_out, BSp)
        feats_out.append(out[:, :n_cent])                     # drop padded cols

    feats = jnp.concatenate(feats_out, axis=0)                # (sumC, B*S)
    feats = feats.reshape(-1, b, npoint).transpose(1, 2, 0)   # (B, S, sumC)
    return new_xyz, feats


# ----------------------------------------------------------------------------
# SetAbstraction forward
# ----------------------------------------------------------------------------
def set_abstraction_forward(clouds, params, npoint, radii, nsamples):
    """clouds: (B, input_dim, N)  ->  (B, 3 + out_feat_dim, npoint[-1])."""
    xyz = jnp.transpose(clouds[:, :3, :], (0, 2, 1))          # (B, N, 3)
    features = (jnp.transpose(clouds[:, 3:, :], (0, 2, 1))
                if clouds.shape[1] > 3 else None)             # (B, N, Cf)

    xyz, feats = sa_msg_forward(xyz, features, npoint[0], radii[0],
                                nsamples[0], params["sa0"])
    if len(npoint) == 2:
        xyz, feats = sa_msg_forward(xyz, feats, npoint[1], radii[1],
                                    nsamples[1], params["sa1"])

    # merge_features: cat(xyz.transpose(1,2), features) along channel dim
    return jnp.concatenate(
        [jnp.transpose(xyz, (0, 2, 1)), jnp.transpose(feats, (0, 2, 1))], axis=1)


# ----------------------------------------------------------------------------
# Deterministic parameter init (Conv2d 1x1 weights, stored channel-last)
# ----------------------------------------------------------------------------
def init_shared_mlp(key, spec):
    ws, bs = [], []
    for ci, co in zip(spec[:-1], spec[1:]):
        key, k1, k2 = jax.random.split(key, 3)
        ws.append(jax.random.normal(k1, (ci, co), jnp.float32) * 0.1)
        bs.append(jax.random.normal(k2, (co,), jnp.float32) * 0.05)
    return (ws, bs), key


def build_params(key, input_dim, mlps):
    input_feat_dim = input_dim - 3
    params = {"sa0": [], "sa1": []}
    # SA0: mlp_spec = [input_feat_dim, *mlp] ; +3 because use_xyz=True
    for mlp in mlps[0]:
        spec = [input_feat_dim + 3] + list(mlp)
        p, key = init_shared_mlp(key, spec)
        params["sa0"].append(p)
    # SA1: mlp_spec = [*mlp] ; first element gets +3 because use_xyz=True
    if len(mlps) == 2:
        for mlp in mlps[1]:
            spec = [mlp[0] + 3] + list(mlp[1:])
            p, key = init_shared_mlp(key, spec)
            params["sa1"].append(p)
    return params, key


# ----------------------------------------------------------------------------
if __name__ == "__main__":
    # Module configuration (small but exercising both SA stages, MSG scales).
    INPUT_DIM = 4                    # 3 xyz + 1 feature channel
    MLPS = [[[8, 16], [8, 16]],      # SA0: two scales, each ends in 16
            [[32, 32]]]              # SA1: one scale, input 32 (=16+16), out 32
    NPOINT = [16, 8]
    RADII = [[0.4, 0.8], [1.2]]
    NSAMPLES = [[8, 16], [8]]
    B, N = 2, 64

    key = jax.random.PRNGKey(0)
    params, key = build_params(key, INPUT_DIM, MLPS)
    key, kc = jax.random.split(key)
    clouds = jax.random.normal(kc, (B, INPUT_DIM, N), jnp.float32)

    fwd = jax.jit(functools.partial(set_abstraction_forward,
                                    npoint=NPOINT, radii=RADII,
                                    nsamples=NSAMPLES))
    out = fwd(clouds, params)
    jax.block_until_ready(out)

    out_feat_dim = sum(m[-1] for m in MLPS[-1])
    assert out.shape == (B, 3 + out_feat_dim, NPOINT[-1]), out.shape
    assert out.dtype == jnp.float32
    print("KERNEL_OK")
</pallas_src>

<mosaic_0001>
module attributes {stable_mosaic.version = 11 : i64} {
  func.func @_mlp_maxpool_kernel(%arg0: i32, %arg1: memref<32x128xf32, #tpu.memory_space<vmem>>, %arg2: memref<64x32xf32, #tpu.memory_space<vmem>>, %arg3: memref<64x1xf32, #tpu.memory_space<vmem>>, %arg4: memref<128x64xf32, #tpu.memory_space<vmem>>, %arg5: memref<128x1xf32, #tpu.memory_space<vmem>>, %arg6: memref<16x128xf32, #tpu.memory_space<vmem>>) attributes {dimension_semantics = [#tpu.dimension_semantics<parallel>], iteration_bounds = array<i64: 1>, scalar_prefetch = 0 : i64, scratch_operands = 0 : i64, tpu.core_type = #tpu.core_type<tc>, window_params = [{transform_indices = @transform_0, window_bounds = array<i64: 32, 128>}, {pipeline_mode = #tpu.pipeline_mode<synchronous>, transform_indices = @transform_1, window_bounds = array<i64: 64, 32>}, {pipeline_mode = #tpu.pipeline_mode<synchronous>, transform_indices = @transform_2, window_bounds = array<i64: 64, 1>}, {pipeline_mode = #tpu.pipeline_mode<synchronous>, transform_indices = @transform_3, window_bounds = array<i64: 128, 64>}, {pipeline_mode = #tpu.pipeline_mode<synchronous>, transform_indices = @transform_4, window_bounds = array<i64: 128, 1>}, {transform_indices = @transform_5, window_bounds = array<i64: 16, 128>}]} {
    %c0 = arith.constant 0 : index
    %c0_0 = arith.constant 0 : index
    %0 = vector.load %arg1[%c0, %c0_0] : memref<32x128xf32, #tpu.memory_space<vmem>>, vector<32x128xf32>
    %c0_1 = arith.constant 0 : index
    %c0_2 = arith.constant 0 : index
    %1 = vector.load %arg2[%c0_1, %c0_2] : memref<64x32xf32, #tpu.memory_space<vmem>>, vector<64x32xf32>
    %c0_3 = arith.constant 0 : index
    %c0_4 = arith.constant 0 : index
    %2 = vector.load %arg3[%c0_3, %c0_4] : memref<64x1xf32, #tpu.memory_space<vmem>>, vector<64x1xf32>
    %cst = arith.constant dense<0.000000e+00> : vector<64x128xf32>
    %3 = tpu.matmul %1, %0, %cst {dimension_numbers = #tpu.dot_dimension_numbers<[1], [0], [0], [1], [0, 0, 1, 1], [], []>} : vector<64x32xf32>, vector<32x128xf32>, vector<64x128xf32> -> vector<64x128xf32>
    %4 = vector.broadcast %2 : vector<64x1xf32> to vector<64x128xf32>
    %5 = arith.addf %3, %4 : vector<64x128xf32>
    %cst_5 = arith.constant 0.000000e+00 : f32
    %6 = vector.broadcast %cst_5 : f32 to vector<64x128xf32>
    %7 = arith.maximumf %5, %6 : vector<64x128xf32>
    %c0_6 = arith.constant 0 : index
    %c0_7 = arith.constant 0 : index
    %8 = vector.load %arg4[%c0_6, %c0_7] : memref<128x64xf32, #tpu.memory_space<vmem>>, vector<128x64xf32>
    %c0_8 = arith.constant 0 : index
    %c0_9 = arith.constant 0 : index
    %9 = vector.load %arg5[%c0_8, %c0_9] : memref<128x1xf32, #tpu.memory_space<vmem>>, vector<128x1xf32>
    %cst_10 = arith.constant dense<0.000000e+00> : vector<128x128xf32>
    %10 = tpu.matmul %8, %7, %cst_10 {dimension_numbers = #tpu.dot_dimension_numbers<[1], [0], [0], [1], [0, 0, 1, 1], [], []>} : vector<128x64xf32>, vector<64x128xf32>, vector<128x128xf32> -> vector<128x128xf32>
    %11 = vector.broadcast %9 : vector<128x1xf32> to vector<128x128xf32>
    %12 = arith.addf %10, %11 : vector<128x128xf32>
    %cst_11 = arith.constant 0.000000e+00 : f32
    %13 = vector.broadcast %cst_11 : f32 to vector<128x128xf32>
    %14 = arith.maximumf %12, %13 : vector<128x128xf32>
    %15 = vector.extract_strided_slice %14 {offsets = [0, 0], sizes = [16, 128], strides = [1, 1]} : vector<128x128xf32> to vector<16x128xf32>
    %16 = vector.extract_strided_slice %14 {offsets = [16, 0], sizes = [16, 128], strides = [1, 1]} : vector<128x128xf32> to vector<16x128xf32>
    %17 = arith.maximumf %15, %16 : vector<16x128xf32>
    %18 = vector.extract_strided_slice %14 {offsets = [32, 0], sizes = [16, 128], strides = [1, 1]} : vector<128x128xf32> to vector<16x128xf32>
    %19 = arith.maximumf %17, %18 : vector<16x128xf32>
    %20 = vector.extract_strided_slice %14 {offsets = [48, 0], sizes = [16, 128], strides = [1, 1]} : vector<128x128xf32> to vector<16x128xf32>
    %21 = arith.maximumf %19, %20 : vector<16x128xf32>
    %22 = vector.extract_strided_slice %14 {offsets = [64, 0], sizes = [16, 128], strides = [1, 1]} : vector<128x128xf32> to vector<16x128xf32>
    %23 = arith.maximumf %21, %22 : vector<16x128xf32>
    %24 = vector.extract_strided_slice %14 {offsets = [80, 0], sizes = [16, 128], strides = [1, 1]} : vector<128x128xf32> to vector<16x128xf32>
    %25 = arith.maximumf %23, %24 : vector<16x128xf32>
    %26 = vector.extract_strided_slice %14 {offsets = [96, 0], sizes = [16, 128], strides = [1, 1]} : vector<128x128xf32> to vector<16x128xf32>
    %27 = arith.maximumf %25, %26 : vector<16x128xf32>
    %28 = vector.extract_strided_slice %14 {offsets = [112, 0], sizes = [16, 128], strides = [1, 1]} : vector<128x128xf32> to vector<16x128xf32>
    %29 = arith.maximumf %27, %28 : vector<16x128xf32>
    %c0_12 = arith.constant 0 : index
    %c0_13 = arith.constant 0 : index
    %30 = vector.load %arg6[%c0_12, %c0_13] : memref<16x128xf32, #tpu.memory_space<vmem>>, vector<16x128xf32>
    tpu.vector_store %arg6[%c0_12, %c0_13], %29 {strides = array<i32>} : memref<16x128xf32, #tpu.memory_space<vmem>>, vector<16x128xf32>,
    return
  }
  func.func @transform_0(%arg0: i32) -> (i32, i32) {
    %c0_i32 = arith.constant 0 : i32
    %c0_i32_0 = arith.constant 0 : i32
    return %c0_i32, %arg0 : i32, i32
  }
  func.func @transform_1(%arg0: i32) -> (i32, i32) {
    %c0_i32 = arith.constant 0 : i32
    %c0_i32_0 = arith.constant 0 : i32
    %c0_i32_1 = arith.constant 0 : i32
    return %c0_i32, %c0_i32_0 : i32, i32
  }
  func.func @transform_2(%arg0: i32) -> (i32, i32) {
    %c0_i32 = arith.constant 0 : i32
    %c0_i32_0 = arith.constant 0 : i32
    %c0_i32_1 = arith.constant 0 : i32
    return %c0_i32, %c0_i32_0 : i32, i32
  }
  func.func @transform_3(%arg0: i32) -> (i32, i32) {
    %c0_i32 = arith.constant 0 : i32
    %c0_i32_0 = arith.constant 0 : i32
    %c0_i32_1 = arith.constant 0 : i32
    return %c0_i32, %c0_i32_0 : i32, i32
  }
  func.func @transform_4(%arg0: i32) -> (i32, i32) {
    %c0_i32 = arith.constant 0 : i32
    %c0_i32_0 = arith.constant 0 : i32
    %c0_i32_1 = arith.constant 0 : i32
    return %c0_i32, %c0_i32_0 : i32, i32
  }
  func.func @transform_5(%arg0: i32) -> (i32, i32) {
    %c0_i32 = arith.constant 0 : i32
    %c0_i32_0 = arith.constant 0 : i32
    return %c0_i32, %arg0 : i32, i32
  }
}

module attributes {stable_mosaic.version = 11 : i64} {
  func.func @_mlp_maxpool_kernel(%arg0: i32, %arg1: memref<64x128xf32, #tpu.memory_space<vmem>>, %arg2: memref<128x64xf32, #tpu.memory_space<vmem>>, %arg3: memref<128x1xf32, #tpu.memory_space<vmem>>, %arg4: memref<256x128xf32, #tpu.memory_space<vmem>>, %arg5: memref<256x1xf32, #tpu.memory_space<vmem>>, %arg6: memref<16x128xf32, #tpu.memory_space<vmem>>) attributes {dimension_semantics = [#tpu.dimension_semantics<parallel>], iteration_bounds = array<i64: 1>, scalar_prefetch = 0 : i64, scratch_operands = 0 : i64, tpu.core_type = #tpu.core_type<tc>, window_params = [{transform_indices = @transform_0, window_bounds = array<i64: 64, 128>}, {pipeline_mode = #tpu.pipeline_mode<synchronous>, transform_indices = @transform_1, window_bounds = array<i64: 128, 64>}, {pipeline_mode = #tpu.pipeline_mode<synchronous>, transform_indices = @transform_2, window_bounds = array<i64: 128, 1>}, {pipeline_mode = #tpu.pipeline_mode<synchronous>, transform_indices = @transform_3, window_bounds = array<i64: 256, 128>}, {pipeline_mode = #tpu.pipeline_mode<synchronous>, transform_indices = @transform_4, window_bounds = array<i64: 256, 1>}, {transform_indices = @transform_5, window_bounds = array<i64: 16, 128>}]} {
    %c0 = arith.constant 0 : index
    %c0_0 = arith.constant 0 : index
    %0 = vector.load %arg1[%c0, %c0_0] : memref<64x128xf32, #tpu.memory_space<vmem>>, vector<64x128xf32>
    %c0_1 = arith.constant 0 : index
    %c0_2 = arith.constant 0 : index
    %1 = vector.load %arg2[%c0_1, %c0_2] : memref<128x64xf32, #tpu.memory_space<vmem>>, vector<128x64xf32>
    %c0_3 = arith.constant 0 : index
    %c0_4 = arith.constant 0 : index
    %2 = vector.load %arg3[%c0_3, %c0_4] : memref<128x1xf32, #tpu.memory_space<vmem>>, vector<128x1xf32>
    %cst = arith.constant dense<0.000000e+00> : vector<128x128xf32>
    %3 = tpu.matmul %1, %0, %cst {dimension_numbers = #tpu.dot_dimension_numbers<[1], [0], [0], [1], [0, 0, 1, 1], [], []>} : vector<128x64xf32>, vector<64x128xf32>, vector<128x128xf32> -> vector<128x128xf32>
    %4 = vector.broadcast %2 : vector<128x1xf32> to vector<128x128xf32>
    %5 = arith.addf %3, %4 : vector<128x128xf32>
    %cst_5 = arith.constant 0.000000e+00 : f32
    %6 = vector.broadcast %cst_5 : f32 to vector<128x128xf32>
    %7 = arith.maximumf %5, %6 : vector<128x128xf32>
    %c0_6 = arith.constant 0 : index
    %c0_7 = arith.constant 0 : index
    %8 = vector.load %arg4[%c0_6, %c0_7] : memref<256x128xf32, #tpu.memory_space<vmem>>, vector<256x128xf32>
    %c0_8 = arith.constant 0 : index
    %c0_9 = arith.constant 0 : index
    %9 = vector.load %arg5[%c0_8, %c0_9] : memref<256x1xf32, #tpu.memory_space<vmem>>, vector<256x1xf32>
    %cst_10 = arith.constant dense<0.000000e+00> : vector<256x128xf32>
    %10 = tpu.matmul %8, %7, %cst_10 {dimension_numbers = #tpu.dot_dimension_numbers<[1], [0], [0], [1], [0, 0, 1, 1], [], []>} : vector<256x128xf32>, vector<128x128xf32>, vector<256x128xf32> -> vector<256x128xf32>
    %11 = vector.broadcast %9 : vector<256x1xf32> to vector<256x128xf32>
    %12 = arith.addf %10, %11 : vector<256x128xf32>
    %cst_11 = arith.constant 0.000000e+00 : f32
    %13 = vector.broadcast %cst_11 : f32 to vector<256x128xf32>
    %14 = arith.maximumf %12, %13 : vector<256x128xf32>
    %15 = vector.extract_strided_slice %14 {offsets = [0, 0], sizes = [16, 128], strides = [1, 1]} : vector<256x128xf32> to vector<16x128xf32>
    %16 = vector.extract_strided_slice %14 {offsets = [16, 0], sizes = [16, 128], strides = [1, 1]} : vector<256x128xf32> to vector<16x128xf32>
    %17 = arith.maximumf %15, %16 : vector<16x128xf32>
    %18 = vector.extract_strided_slice %14 {offsets = [32, 0], sizes = [16, 128], strides = [1, 1]} : vector<256x128xf32> to vector<16x128xf32>
    %19 = arith.maximumf %17, %18 : vector<16x128xf32>
    %20 = vector.extract_strided_slice %14 {offsets = [48, 0], sizes = [16, 128], strides = [1, 1]} : vector<256x128xf32> to vector<16x128xf32>
    %21 = arith.maximumf %19, %20 : vector<16x128xf32>
    %22 = vector.extract_strided_slice %14 {offsets = [64, 0], sizes = [16, 128], strides = [1, 1]} : vector<256x128xf32> to vector<16x128xf32>
    %23 = arith.maximumf %21, %22 : vector<16x128xf32>
    %24 = vector.extract_strided_slice %14 {offsets = [80, 0], sizes = [16, 128], strides = [1, 1]} : vector<256x128xf32> to vector<16x128xf32>
    %25 = arith.maximumf %23, %24 : vector<16x128xf32>
    %26 = vector.extract_strided_slice %14 {offsets = [96, 0], sizes = [16, 128], strides = [1, 1]} : vector<256x128xf32> to vector<16x128xf32>
    %27 = arith.maximumf %25, %26 : vector<16x128xf32>
    %28 = vector.extract_strided_slice %14 {offsets = [112, 0], sizes = [16, 128], strides = [1, 1]} : vector<256x128xf32> to vector<16x128xf32>
    %29 = arith.maximumf %27, %28 : vector<16x128xf32>
    %30 = vector.extract_strided_slice %14 {offsets = [128, 0], sizes = [16, 128], strides = [1, 1]} : vector<256x128xf32> to vector<16x128xf32>
    %31 = arith.maximumf %29, %30 : vector<16x128xf32>
    %32 = vector.extract_strided_slice %14 {offsets = [144, 0], sizes = [16, 128], strides = [1, 1]} : vector<256x128xf32> to vector<16x128xf32>
    %33 = arith.maximumf %31, %32 : vector<16x128xf32>
    %34 = vector.extract_strided_slice %14 {offsets = [160, 0], sizes = [16, 128], strides = [1, 1]} : vector<256x128xf32> to vector<16x128xf32>
    %35 = arith.maximumf %33, %34 : vector<16x128xf32>
    %36 = vector.extract_strided_slice %14 {offsets = [176, 0], sizes = [16, 128], strides = [1, 1]} : vector<256x128xf32> to vector<16x128xf32>
    %37 = arith.maximumf %35, %36 : vector<16x128xf32>
    %38 = vector.extract_strided_slice %14 {offsets = [192, 0], sizes = [16, 128], strides = [1, 1]} : vector<256x128xf32> to vector<16x128xf32>
    %39 = arith.maximumf %37, %38 : vector<16x128xf32>
    %40 = vector.extract_strided_slice %14 {offsets = [208, 0], sizes = [16, 128], strides = [1, 1]} : vector<256x128xf32> to vector<16x128xf32>
    %41 = arith.maximumf %39, %40 : vector<16x128xf32>
    %42 = vector.extract_strided_slice %14 {offsets = [224, 0], sizes = [16, 128], strides = [1, 1]} : vector<256x128xf32> to vector<16x128xf32>
    %43 = arith.maximumf %41, %42 : vector<16x128xf32>
    %44 = vector.extract_strided_slice %14 {offsets = [240, 0], sizes = [16, 128], strides = [1, 1]} : vector<256x128xf32> to vector<16x128xf32>
    %45 = arith.maximumf %43, %44 : vector<16x128xf32>
    %c0_12 = arith.constant 0 : index
    %c0_13 = arith.constant 0 : index
    %46 = vector.load %arg6[%c0_12, %c0_13] : memref<16x128xf32, #tpu.memory_space<vmem>>, vector<16x128xf32>
    tpu.vector_store %arg6[%c0_12, %c0_13], %45 {strides = array<i32>} : memref<16x128xf32, #tpu.memory_space<vmem>>, vector<16x128xf32>,
    return
  }
  func.func @transform_0(%arg0: i32) -> (i32, i32) {
    %c0_i32 = arith.constant 0 : i32
    %c0_i32_0 = arith.constant 0 : i32
    return %c0_i32, %arg0 : i32, i32
  }
  func.func @transform_1(%arg0: i32) -> (i32, i32) {
    %c0_i32 = arith.constant 0 : i32
    %c0_i32_0 = arith.constant 0 : i32
    %c0_i32_1 = arith.constant 0 : i32
    return %c0_i32, %c0_i32_0 : i32, i32
  }
  func.func @transform_2(%arg0: i32) -> (i32, i32) {
    %c0_i32 = arith.constant 0 : i32
    %c0_i32_0 = arith.constant 0 : i32
    %c0_i32_1 = arith.constant 0 : i32
    return %c0_i32, %c0_i32_0 : i32, i32
  }
  func.func @transform_3(%arg0: i32) -> (i32, i32) {
    %c0_i32 = arith.constant 0 : i32
    %c0_i32_0 = arith.constant 0 : i32
    %c0_i32_1 = arith.constant 0 : i32
    return %c0_i32, %c0_i32_0 : i32, i32
  }
  func.func @transform_4(%arg0: i32) -> (i32, i32) {
    %c0_i32 = arith.constant 0 : i32
    %c0_i32_0 = arith.constant 0 : i32
    %c0_i32_1 = arith.constant 0 : i32
    return %c0_i32, %c0_i32_0 : i32, i32
  }
  func.func @transform_5(%arg0: i32) -> (i32, i32) {
    %c0_i32 = arith.constant 0 : i32
    %c0_i32_0 = arith.constant 0 : i32
    return %c0_i32, %arg0 : i32, i32
  }
}

module attributes {stable_mosaic.version = 11 : i64} {
  func.func @_mlp_maxpool_kernel(%arg0: i32, %arg1: memref<280x128xf32, #tpu.memory_space<vmem>>, %arg2: memref<256x280xf32, #tpu.memory_space<vmem>>, %arg3: memref<256x1xf32, #tpu.memory_space<vmem>>, %arg4: memref<32x128xf32, #tpu.memory_space<vmem>>) attributes {dimension_semantics = [#tpu.dimension_semantics<parallel>], iteration_bounds = array<i64: 1>, scalar_prefetch = 0 : i64, scratch_operands = 0 : i64, tpu.core_type = #tpu.core_type<tc>, window_params = [{transform_indices = @transform_0, window_bounds = array<i64: 280, 128>}, {pipeline_mode = #tpu.pipeline_mode<synchronous>, transform_indices = @transform_1, window_bounds = array<i64: 256, 280>}, {pipeline_mode = #tpu.pipeline_mode<synchronous>, transform_indices = @transform_2, window_bounds = array<i64: 256, 1>}, {transform_indices = @transform_3, window_bounds = array<i64: 32, 128>}]} {
    %c0 = arith.constant 0 : index
    %c0_0 = arith.constant 0 : index
    %0 = vector.load %arg1[%c0, %c0_0] : memref<280x128xf32, #tpu.memory_space<vmem>>, vector<280x128xf32>
    %c0_1 = arith.constant 0 : index
    %c0_2 = arith.constant 0 : index
    %1 = vector.load %arg2[%c0_1, %c0_2] : memref<256x280xf32, #tpu.memory_space<vmem>>, vector<256x280xf32>
    %c0_3 = arith.constant 0 : index
    %c0_4 = arith.constant 0 : index
    %2 = vector.load %arg3[%c0_3, %c0_4] : memref<256x1xf32, #tpu.memory_space<vmem>>, vector<256x1xf32>
    %cst = arith.constant dense<0.000000e+00> : vector<256x128xf32>
    %3 = tpu.matmul %1, %0, %cst {dimension_numbers = #tpu.dot_dimension_numbers<[1], [0], [0], [1], [0, 0, 1, 1], [], []>} : vector<256x280xf32>, vector<280x128xf32>, vector<256x128xf32> -> vector<256x128xf32>
    %4 = vector.broadcast %2 : vector<256x1xf32> to vector<256x128xf32>
    %5 = arith.addf %3, %4 : vector<256x128xf32>
    %cst_5 = arith.constant 0.000000e+00 : f32
    %6 = vector.broadcast %cst_5 : f32 to vector<256x128xf32>
    %7 = arith.maximumf %5, %6 : vector<256x128xf32>
    %8 = vector.extract_strided_slice %7 {offsets = [0, 0], sizes = [32, 128], strides = [1, 1]} : vector<256x128xf32> to vector<32x128xf32>
    %9 = vector.extract_strided_slice %7 {offsets = [32, 0], sizes = [32, 128], strides = [1, 1]} : vector<256x128xf32> to vector<32x128xf32>
    %10 = arith.maximumf %8, %9 : vector<32x128xf32>
    %11 = vector.extract_strided_slice %7 {offsets = [64, 0], sizes = [32, 128], strides = [1, 1]} : vector<256x128xf32> to vector<32x128xf32>
    %12 = arith.maximumf %10, %11 : vector<32x128xf32>
    %13 = vector.extract_strided_slice %7 {offsets = [96, 0], sizes = [32, 128], strides = [1, 1]} : vector<256x128xf32> to vector<32x128xf32>
    %14 = arith.maximumf %12, %13 : vector<32x128xf32>
    %15 = vector.extract_strided_slice %7 {offsets = [128, 0], sizes = [32, 128], strides = [1, 1]} : vector<256x128xf32> to vector<32x128xf32>
    %16 = arith.maximumf %14, %15 : vector<32x128xf32>
    %17 = vector.extract_strided_slice %7 {offsets = [160, 0], sizes = [32, 128], strides = [1, 1]} : vector<256x128xf32> to vector<32x128xf32>
    %18 = arith.maximumf %16, %17 : vector<32x128xf32>
    %19 = vector.extract_strided_slice %7 {offsets = [192, 0], sizes = [32, 128], strides = [1, 1]} : vector<256x128xf32> to vector<32x128xf32>
    %20 = arith.maximumf %18, %19 : vector<32x128xf32>
    %21 = vector.extract_strided_slice %7 {offsets = [224, 0], sizes = [32, 128], strides = [1, 1]} : vector<256x128xf32> to vector<32x128xf32>
    %22 = arith.maximumf %20, %21 : vector<32x128xf32>
    %c0_6 = arith.constant 0 : index
    %c0_7 = arith.constant 0 : index
    %23 = vector.load %arg4[%c0_6, %c0_7] : memref<32x128xf32, #tpu.memory_space<vmem>>, vector<32x128xf32>
    tpu.vector_store %arg4[%c0_6, %c0_7], %22 {strides = array<i32>} : memref<32x128xf32, #tpu.memory_space<vmem>>, vector<32x128xf32>,
    return
  }
  func.func @transform_0(%arg0: i32) -> (i32, i32) {
    %c0_i32 = arith.constant 0 : i32
    %c0_i32_0 = arith.constant 0 : i32
    return %c0_i32, %arg0 : i32, i32
  }
  func.func @transform_1(%arg0: i32) -> (i32, i32) {
    %c0_i32 = arith.constant 0 : i32
    %c0_i32_0 = arith.constant 0 : i32
    %c0_i32_1 = arith.constant 0 : i32
    return %c0_i32, %c0_i32_0 : i32, i32
  }
  func.func @transform_2(%arg0: i32) -> (i32, i32) {
    %c0_i32 = arith.constant 0 : i32
    %c0_i32_0 = arith.constant 0 : i32
    %c0_i32_1 = arith.constant 0 : i32
    return %c0_i32, %c0_i32_0 : i32, i32
  }
  func.func @transform_3(%arg0: i32) -> (i32, i32) {
    %c0_i32 = arith.constant 0 : i32
    %c0_i32_0 = arith.constant 0 : i32
    return %c0_i32, %arg0 : i32, i32
  }
}

</mosaic_0001>

<llo_original>
// kernel: custom-call.20
$region0: #{custom-call.20}
  %s0 = inlined_call_operand.vmem [shape: f32[2,64], index: 0, kind: output, shape index: {}]

// kernel: set_abstraction_forward.3
$region0: #{set_abstraction_forward.3}
  #allocation0 [shape = 'u32[]', space=smem, size = 0x4, offset = 0x4, fixed_abs, tag = 'smem constant byte address 0x4 - core index']
  #allocation1 [shape = 'u32[144,128]{1,0:T(1,128)}', space=vmem, size = 0x12000, scoped, tag = 'internal scratch']
  %s0 = inlined_call_operand.vmem [shape: f32[32,128], index: 0, kind: input, shape index: {}]
  %s1 = inlined_call_operand.vmem [shape: f32[64,32], index: 1, kind: input, shape index: {}]
  %s2 = inlined_call_operand.vmem [shape: f32[64,1], index: 2, kind: input, shape index: {}]
  %s3 = inlined_call_operand.vmem [shape: f32[128,64], index: 3, kind: input, shape index: {}]
  %s4 = inlined_call_operand.vmem [shape: f32[128,1], index: 4, kind: input, shape index: {}]
  %s5 = inlined_call_operand.vmem [shape: f32[16,128], index: 5, kind: output, shape index: {}]
  %s6 = sld [smem:[#allocation0]]
  $region30: #{set_abstraction_forward.3} parent=0
    _
  %s8 = ssub.s32 1, %s6
  %s9 = scalar_select 0, %s8, %s6
  // Predicated region
  $region2: #{set_abstraction_forward.3} parent=0 // pred_check
    _
  $region3: #{set_abstraction_forward.3} parent=0 // pred_check_branch
    %11 = sbr.rel (0) target = $region5
  $region4: #{set_abstraction_forward.3} parent=0 // pred_region
    _
  $region5: #{set_abstraction_forward.3} parent=0 // pred_fallthru
    _
  // Predicated region
  $region6: #{set_abstraction_forward.3} parent=0 // pred_check
    _
  $region7: #{set_abstraction_forward.3} parent=0 // pred_check_branch
    %13 = sbr.rel (0) target = $region9
  $region8: #{set_abstraction_forward.3} parent=0 // pred_region
    _
  $region9: #{set_abstraction_forward.3} parent=0 // pred_fallthru
    _
  // Predicated region
  $region10: #{set_abstraction_forward.3} parent=0 // pred_check
    _
  $region11: #{set_abstraction_forward.3} parent=0 // pred_check_branch
    %15 = sbr.rel (0) target = $region13
  $region12: #{set_abstraction_forward.3} parent=0 // pred_region
    _
  $region13: #{set_abstraction_forward.3} parent=0 // pred_fallthru
    _
  // Predicated region
  $region14: #{set_abstraction_forward.3} parent=0 // pred_check
    _
  $region15: #{set_abstraction_forward.3} parent=0 // pred_check_branch
    %17 = sbr.rel (0) target = $region17
  $region16: #{set_abstraction_forward.3} parent=0 // pred_region
    _
  $region17: #{set_abstraction_forward.3} parent=0 // pred_fallthru
    _
  // Predicated region
  $region18: #{set_abstraction_forward.3} parent=0 // pred_check
    _
  $region19: #{set_abstraction_forward.3} parent=0 // pred_check_branch
    %19 = sbr.rel (0) target = $region21
  $region20: #{set_abstraction_forward.3} parent=0 // pred_region
    _
  $region21: #{set_abstraction_forward.3} parent=0 // pred_fallthru
    _
  %v20 = vld [vmem:[%s0] sm:$0xff]
  %v21 = vld [vmem:[%s0 + $0x8] sm:$0xff]
  %v22 = vld [vmem:[%s0 + $0x10] sm:$0xff]
  %v23 = vld [vmem:[%s0 + $0x18] sm:$0xff]
  %v24 = vld [vmem:[%s1] sm:$0xff]
  %v25 = vld [vmem:[%s1 + $0x8] sm:$0xff]
  %v26 = vld [vmem:[%s1 + $0x10] sm:$0xff]
  %v27 = vld [vmem:[%s1 + $0x18] sm:$0xff]
  %v28 = vld [vmem:[%s1 + $0x20] sm:$0xff]
  %v29 = vld [vmem:[%s1 + $0x28] sm:$0xff]
  %v30 = vld [vmem:[%s1 + $0x30] sm:$0xff]
  %v31 = vld [vmem:[%s1 + $0x38] sm:$0xff]
  %v32 = vld [vmem:[%s2] sm:$0xff]
  %v33 = vld [vmem:[%s2 + $0x8] sm:$0xff]
  %v34 = vld [vmem:[%s2 + $0x10] sm:$0xff]
  %v35 = vld [vmem:[%s2 + $0x18] sm:$0xff]
  %v36 = vld [vmem:[%s2 + $0x20] sm:$0xff]
  %v37 = vld [vmem:[%s2 + $0x28] sm:$0xff]
  %v38 = vld [vmem:[%s2 + $0x30] sm:$0xff]
  %v39 = vld [vmem:[%s2 + $0x38] sm:$0xff]
  %41 = vset.pattern.permute.xlu0 0
  %42 = vperm.xlu0 %41, %v32
  %v43 = vpop.permute.xlu0 %42
  %46 = vset.pattern.permute.xlu0 0
  %47 = vperm.xlu0 %46, %v33
  %v48 = vpop.permute.xlu0 %47
  %51 = vset.pattern.permute.xlu0 0
  %52 = vperm.xlu0 %51, %v34
  %v53 = vpop.permute.xlu0 %52
  %56 = vset.pattern.permute.xlu0 0
  %57 = vperm.xlu0 %56, %v35
  %v58 = vpop.permute.xlu0 %57
  %61 = vset.pattern.permute.xlu0 0
  %62 = vperm.xlu0 %61, %v36
  %v63 = vpop.permute.xlu0 %62
  %66 = vset.pattern.permute.xlu0 0
  %67 = vperm.xlu0 %66, %v37
  %v68 = vpop.permute.xlu0 %67
  %71 = vset.pattern.permute.xlu0 0
  %72 = vperm.xlu0 %71, %v38
  %v73 = vpop.permute.xlu0 %72
  %76 = vset.pattern.permute.xlu0 0
  %77 = vperm.xlu0 %76, %v39
  %v78 = vpop.permute.xlu0 %77
  %vm80 = vcmask 261120
  %v82 = vsel %vm80, %v24, 0
  %v85 = vsel %vm80, %v25, 0
  %v88 = vsel %vm80, %v26, 0
  %v91 = vsel %vm80, %v27, 0
  %v94 = vsel %vm80, %v28, 0
  %v97 = vsel %vm80, %v29, 0
  %v100 = vsel %vm80, %v30, 0
  %v103 = vsel %vm80, %v31, 0
  %105 = vmatprep.subr.mxu0 0.0
  %106 = vmatpush1.msra.mxu0 0.0
  %107 = vmatprep.subr.mxu0 0.0
  %108 = vmatpush1.msra.mxu0 0.0
  %109 = vmatprep.subr.mxu0 0.0
  %110 = vmatpush1.msra.mxu0 0.0
  %111 = vmatprep.subr.mxu0 0.0
  %112 = vmatpush1.msra.mxu0 0.0
  %113 = vmatprep.subr.mxu0 0.0
  %114 = vmatpush1.msra.mxu0 0.0
  %115 = vmatprep.subr.mxu0 0.0
  %116 = vmatpush1.msra.mxu0 0.0
  %117 = vmatprep.subr.mxu0 0.0
  %118 = vmatpush1.msra.mxu0 0.0
  %119 = vmatprep.subr.mxu0 0.0
  %120 = vmatpush1.msra.mxu0 0.0
  %121 = vmatprep.subr.mxu0 0.0
  %122 = vmatpush1.msra.mxu0 0.0
  %123 = vmatprep.subr.mxu0 0.0
  %124 = vmatpush1.msra.mxu0 0.0
  %125 = vmatprep.subr.mxu0 0.0
  %126 = vmatpush1.msra.mxu0 0.0
  %127 = vmatprep.subr.mxu0 0.0
  %128 = vmatpush1.msra.mxu0 0.0
  %129 = vmatprep.subr.mxu0 0.0
  %130 = vmatpush1.msra.mxu0 %v23
  %131 = vmatprep.subr.mxu0 0.0
  %132 = vmatpush1.msra.mxu0 %v22
  %133 = vmatprep.subr.mxu0 0.0
  %134 = vmatpush1.msra.mxu0 %v21
  %135 = vmatprep.subr.mxu0 0.0
  %136 = vmatpush1.msra.mxu0 %v20
  %137 = vmatprep.subr.mxu0 0.0
  %138 = vmatpush2.msra.mxu0 0.0
  %139 = vmatprep.subr.mxu0 0.0
  %140 = vmatpush2.msra.mxu0 0.0
  %141 = vmatprep.subr.mxu0 0.0
  %142 = vmatpush2.msra.mxu0 0.0
  %143 = vmatprep.subr.mxu0 0.0
  %144 = vmatpush2.msra.mxu0 0.0
  %145 = vmatprep.subr.mxu0 0.0
  %146 = vmatpush2.msra.mxu0 0.0
  %147 = vmatprep.subr.mxu0 0.0
  %148 = vmatpush2.msra.mxu0 0.0
  %149 = vmatprep.subr.mxu0 0.0
  %150 = vmatpush2.msra.mxu0 0.0
  %151 = vmatprep.subr.mxu0 0.0
  %152 = vmatpush2.msra.mxu0 0.0
  %153 = vmatprep.subr.mxu0 0.0
  %154 = vmatpush2.msra.mxu0 0.0
  %155 = vmatprep.subr.mxu0 0.0
  %156 = vmatpush2.msra.mxu0 0.0
  %157 = vmatprep.subr.mxu0 0.0
  %158 = vmatpush2.msra.mxu0 0.0
  %159 = vmatprep.subr.mxu0 0.0
  %160 = vmatpush2.msra.mxu0 0.0
  %161 = vmatprep.subr.mxu0 0.0
  %162 = vmatpush2.msra.mxu0 0.0
  %163 = vmatprep.subr.mxu0 0.0
  %164 = vmatpush2.msra.mxu0 0.0
  %165 = vmatprep.subr.mxu0 0.0
  %166 = vmatpush2.msra.mxu0 0.0
  %167 = vmatprep.subr.mxu0 0.0
  %168 = vmatpush2.msra.mxu0 0.0
  %169 = vmatprep.mubr.f32.mxu0 0.0
  %170 = vmatmul.mubr.f32.gmra.mxu0 %v82
  %v171 = vpop.f32.mrf.mxu0
  %v172 = vadd.f32 %v43, %v171
  %v173 = vpop.f32.mrf.mxu0
  %174 = vmatprep.mubr.f32.mxu0 0.0
  %175 = vmatmul.mubr.f32.gmra.mxu0 %v85
  %v176 = vpop.f32.mrf.mxu0
  %v177 = vadd.f32 %v48, %v176
  %v178 = vpop.f32.mrf.mxu0
  %179 = vmatprep.mubr.f32.mxu0 0.0
  %180 = vmatmul.mubr.f32.gmra.mxu0 %v88
  %v181 = vpop.f32.mrf.mxu0
  %v182 = vadd.f32 %v53, %v181
  %v183 = vpop.f32.mrf.mxu0
  %184 = vmatprep.mubr.f32.mxu0 0.0
  %185 = vmatmul.mubr.f32.gmra.mxu0 %v91
  %v186 = vpop.f32.mrf.mxu0
  %v187 = vadd.f32 %v58, %v186
  %v188 = vpop.f32.mrf.mxu0
  %189 = vmatprep.mubr.f32.mxu0 0.0
  %190 = vmatmul.mubr.f32.gmra.mxu0 %v94
  %v191 = vpop.f32.mrf.mxu0
  %v192 = vadd.f32 %v63, %v191
  %v193 = vpop.f32.mrf.mxu0
  %194 = vmatprep.mubr.f32.mxu0 0.0
  %195 = vmatmul.mubr.f32.gmra.mxu0 %v97
  %v196 = vpop.f32.mrf.mxu0
  %v197 = vadd.f32 %v68, %v196
  %v198 = vpop.f32.mrf.mxu0
  %199 = vmatprep.mubr.f32.mxu0 0.0
  %200 = vmatmul.mubr.f32.gmra.mxu0 %v100
  %v201 = vpop.f32.mrf.mxu0
  %v202 = vadd.f32 %v73, %v201
  %v203 = vpop.f32.mrf.mxu0
  %204 = vmatprep.mubr.f32.mxu0 0.0
  %205 = vmatmul.mubr.f32.gmra.mxu0 %v103
  %v206 = vpop.f32.mrf.mxu0
  %v207 = vadd.f32 %v78, %v206
  %v208 = vpop.f32.mrf.mxu0
  %209 = vdwg.mxu0
  %v210 = vmax.f32 %v172, 0.0
  %v211 = vmax.f32 %v177, 0.0
  %v212 = vmax.f32 %v182, 0.0
  %v213 = vmax.f32 %v187, 0.0
  %v214 = vmax.f32 %v192, 0.0
  %v215 = vmax.f32 %v197, 0.0
  %v216 = vmax.f32 %v202, 0.0
  %v217 = vmax.f32 %v207, 0.0
  %v218 = vld [vmem:[%s3] sm:$0xff]
  %v219 = vld [vmem:[%s3 + $0x8] sm:$0xff]
  %v220 = vld [vmem:[%s3 + $0x10] sm:$0xff]
  %v221 = vld [vmem:[%s3 + $0x18] sm:$0xff]
  %v222 = vld [vmem:[%s3 + $0x20] sm:$0xff]
  %v223 = vld [vmem:[%s3 + $0x28] sm:$0xff]
  %v224 = vld [vmem:[%s3 + $0x30] sm:$0xff]
  %v225 = vld [vmem:[%s3 + $0x38] sm:$0xff]
  %v226 = vld [vmem:[%s3 + $0x40] sm:$0xff]
  %v227 = vld [vmem:[%s3 + $0x48] sm:$0xff]
  %v228 = vld [vmem:[%s3 + $0x50] sm:$0xff]
  %v229 = vld [vmem:[%s3 + $0x58] sm:$0xff]
  %v230 = vld [vmem:[%s3 + $0x60] sm:$0xff]
  %v231 = vld [vmem:[%s3 + $0x68] sm:$0xff]
  %v232 = vld [vmem:[%s3 + $0x70] sm:$0xff]
  %v233 = vld [vmem:[%s3 + $0x78] sm:$0xff]
  %v234 = vld [vmem:[%s4] sm:$0xff]
  %v235 = vld [vmem:[%s4 + $0x8] sm:$0xff]
  %v236 = vld [vmem:[%s4 + $0x10] sm:$0xff]
  %v237 = vld [vmem:[%s4 + $0x18] sm:$0xff]
  %v238 = vld [vmem:[%s4 + $0x20] sm:$0xff]
  %v239 = vld [vmem:[%s4 + $0x28] sm:$0xff]
  %v240 = vld [vmem:[%s4 + $0x30] sm:$0xff]
  %v241 = vld [vmem:[%s4 + $0x38] sm:$0xff]
  %v242 = vld [vmem:[%s4 + $0x40] sm:$0xff]
  %v243 = vld [vmem:[%s4 + $0x48] sm:$0xff]
  %v244 = vld [vmem:[%s4 + $0x50] sm:$0xff]
  %v245 = vld [vmem:[%s4 + $0x58] sm:$0xff]
  %v246 = vld [vmem:[%s4 + $0x60] sm:$0xff]
  %v247 = vld [vmem:[%s4 + $0x68] sm:$0xff]
  %v248 = vld [vmem:[%s4 + $0x70] sm:$0xff]
  %v249 = vld [vmem:[%s4 + $0x78] sm:$0xff]
  %251 = vset.pattern.permute.xlu0 0
  %252 = vperm.xlu0 %251, %v234
  %v253 = vpop.permute.xlu0 %252
  %256 = vset.pattern.permute.xlu0 0
  %257 = vperm.xlu0 %256, %v235
  %v258 = vpop.permute.xlu0 %257
  %261 = vset.pattern.permute.xlu0 0
  %262 = vperm.xlu0 %261, %v236
  %v263 = vpop.permute.xlu0 %262
  %266 = vset.pattern.permute.xlu0 0
  %267 = vperm.xlu0 %266, %v237
  %v268 = vpop.permute.xlu0 %267
  %271 = vset.pattern.permute.xlu0 0
  %272 = vperm.xlu0 %271, %v238
  %v273 = vpop.permute.xlu0 %272
  %276 = vset.pattern.permute.xlu0 0
  %277 = vperm.xlu0 %276, %v239
  %v278 = vpop.permute.xlu0 %277
  %281 = vset.pattern.permute.xlu0 0
  %282 = vperm.xlu0 %281, %v240
  %v283 = vpop.permute.xlu0 %282
  %286 = vset.pattern.permute.xlu0 0
  %287 = vperm.xlu0 %286, %v241
  %v288 = vpop.permute.xlu0 %287
  %291 = vset.pattern.permute.xlu0 0
  %292 = vperm.xlu0 %291, %v242
  %v293 = vpop.permute.xlu0 %292
  %296 = vset.pattern.permute.xlu0 0
  %297 = vperm.xlu0 %296, %v243
  %v298 = vpop.permute.xlu0 %297
  %301 = vset.pattern.permute.xlu0 0
  %302 = vperm.xlu0 %301, %v244
  %v303 = vpop.permute.xlu0 %302
  %306 = vset.pattern.permute.xlu0 0
  %307 = vperm.xlu0 %306, %v245
  %v308 = vpop.permute.xlu0 %307
  %311 = vset.pattern.permute.xlu0 0
  %312 = vperm.xlu0 %311, %v246
  %v313 = vpop.permute.xlu0 %312
  %316 = vset.pattern.permute.xlu0 0
  %317 = vperm.xlu0 %316, %v247
  %v318 = vpop.permute.xlu0 %317
  %321 = vset.pattern.permute.xlu0 0
  %322 = vperm.xlu0 %321, %v248
  %v323 = vpop.permute.xlu0 %322
  %326 = vset.pattern.permute.xlu0 0
  %327 = vperm.xlu0 %326, %v249
  %v328 = vpop.permute.xlu0 %327
  %vm330 = vcmask 523264
  %v332 = vsel %vm330, %v218, 0
  %v335 = vsel %vm330, %v219, 0
  %v338 = vsel %vm330, %v220, 0
  %v341 = vsel %vm330, %v221, 0
  %v344 = vsel %vm330, %v222, 0
  %v347 = vsel %vm330, %v223, 0
  %v350 = vsel %vm330, %v224, 0
  %v353 = vsel %vm330, %v225, 0
  %v356 = vsel %vm330, %v226, 0
  %v359 = vsel %vm330, %v227, 0
  %v362 = vsel %vm330, %v228, 0
  %v365 = vsel %vm330, %v229, 0
  %v368 = vsel %vm330, %v230, 0
  %v371 = vsel %vm330, %v231, 0
  %v374 = vsel %vm330, %v232, 0
  %v377 = vsel %vm330, %v233, 0
  %379 = vmatprep.subr.mxu0 0.0
  %380 = vmatpush1.msra.mxu0 0.0
  %381 = vmatprep.subr.mxu0 0.0
  %382 = vmatpush1.msra.mxu0 0.0
  %383 = vmatprep.subr.mxu0 0.0
  %384 = vmatpush1.msra.mxu0 0.0
  %385 = vmatprep.subr.mxu0 0.0
  %386 = vmatpush1.msra.mxu0 0.0
  %387 = vmatprep.subr.mxu0 0.0
  %388 = vmatpush1.msra.mxu0 0.0
  %389 = vmatprep.subr.mxu0 0.0
  %390 = vmatpush1.msra.mxu0 0.0
  %391 = vmatprep.subr.mxu0 0.0
  %392 = vmatpush1.msra.mxu0 0.0
  %393 = vmatprep.subr.mxu0 0.0
  %394 = vmatpush1.msra.mxu0 0.0
  %395 = vmatprep.subr.mxu0 0.0
  %396 = vmatpush1.msra.mxu0 %v217
  %397 = vmatprep.subr.mxu0 0.0
  %398 = vmatpush1.msra.mxu0 %v216
  %399 = vmatprep.subr.mxu0 0.0
  %400 = vmatpush1.msra.mxu0 %v215
  %401 = vmatprep.subr.mxu0 0.0
  %402 = vmatpush1.msra.mxu0 %v214
  %403 = vmatprep.subr.mxu0 0.0
  %404 = vmatpush1.msra.mxu0 %v213
  %405 = vmatprep.subr.mxu0 0.0
  %406 = vmatpush1.msra.mxu0 %v212
  %407 = vmatprep.subr.mxu0 0.0
  %408 = vmatpush1.msra.mxu0 %v211
  %409 = vmatprep.subr.mxu0 0.0
  %410 = vmatpush1.msra.mxu0 %v210
  %411 = vmatprep.subr.mxu0 0.0
  %412 = vmatpush2.msra.mxu0 0.0
  %413 = vmatprep.subr.mxu0 0.0
  %414 = vmatpush2.msra.mxu0 0.0
  %415 = vmatprep.subr.mxu0 0.0
  %416 = vmatpush2.msra.mxu0 0.0
  %417 = vmatprep.subr.mxu0 0.0
  %418 = vmatpush2.msra.mxu0 0.0
  %419 = vmatprep.subr.mxu0 0.0
  %420 = vmatpush2.msra.mxu0 0.0
  %421 = vmatprep.subr.mxu0 0.0
  %422 = vmatpush2.msra.mxu0 0.0
  %423 = vmatprep.subr.mxu0 0.0
  %424 = vmatpush2.msra.mxu0 0.0
  %425 = vmatprep.subr.mxu0 0.0
  %426 = vmatpush2.msra.mxu0 0.0
  %427 = vmatprep.subr.mxu0 0.0
  %428 = vmatpush2.msra.mxu0 0.0
  %429 = vmatprep.subr.mxu0 0.0
  %430 = vmatpush2.msra.mxu0 0.0
  %431 = vmatprep.subr.mxu0 0.0
  %432 = vmatpush2.msra.mxu0 0.0
  %433 = vmatprep.subr.mxu0 0.0
  %434 = vmatpush2.msra.mxu0 0.0
  %435 = vmatprep.subr.mxu0 0.0
  %436 = vmatpush2.msra.mxu0 0.0
  %437 = vmatprep.subr.mxu0 0.0
  %438 = vmatpush2.msra.mxu0 0.0
  %439 = vmatprep.subr.mxu0 0.0
  %440 = vmatpush2.msra.mxu0 0.0
  %441 = vmatprep.subr.mxu0 0.0
  %442 = vmatpush2.msra.mxu0 0.0
  %443 = vmatprep.mubr.f32.mxu0 0.0
  %444 = vmatmul.mubr.f32.gmra.mxu0 %v332
  %v445 = vpop.f32.mrf.mxu0
  %v446 = vadd.f32 %v253, %v445
  %v447 = vpop.f32.mrf.mxu0
  %448 = vmatprep.mubr.f32.mxu0 0.0
  %449 = vmatmul.mubr.f32.gmra.mxu0 %v335
  %v450 = vpop.f32.mrf.mxu0
  %v451 = vadd.f32 %v258, %v450
  %v452 = vpop.f32.mrf.mxu0
  %453 = vmatprep.mubr.f32.mxu0 0.0
  %454 = vmatmul.mubr.f32.gmra.mxu0 %v338
  %v455 = vpop.f32.mrf.mxu0
  %v456 = vadd.f32 %v263, %v455
  %v457 = vpop.f32.mrf.mxu0
  %458 = vmatprep.mubr.f32.mxu0 0.0
  %459 = vmatmul.mubr.f32.gmra.mxu0 %v341
  %v460 = vpop.f32.mrf.mxu0
  %v461 = vadd.f32 %v268, %v460
  %v462 = vpop.f32.mrf.mxu0
  %463 = vmatprep.mubr.f32.mxu0 0.0
  %464 = vmatmul.mubr.f32.gmra.mxu0 %v344
  %v465 = vpop.f32.mrf.mxu0
  %v466 = vadd.f32 %v273, %v465
  %v467 = vpop.f32.mrf.mxu0
  %468 = vmatprep.mubr.f32.mxu0 0.0
  %469 = vmatmul.mubr.f32.gmra.mxu0 %v347
  %v470 = vpop.f32.mrf.mxu0
  %v471 = vadd.f32 %v278, %v470
  %v472 = vpop.f32.mrf.mxu0
  %473 = vmatprep.mubr.f32.mxu0 0.0
  %474 = vmatmul.mubr.f32.gmra.mxu0 %v350
  %v475 = vpop.f32.mrf.mxu0
  %v476 = vadd.f32 %v283, %v475
  %v477 = vpop.f32.mrf.mxu0
  %478 = vmatprep.mubr.f32.mxu0 0.0
  %479 = vmatmul.mubr.f32.gmra.mxu0 %v353
  %v480 = vpop.f32.mrf.mxu0
  %v481 = vadd.f32 %v288, %v480
  %v482 = vpop.f32.mrf.mxu0
  %483 = vmatprep.mubr.f32.mxu0 0.0
  %484 = vmatmul.mubr.f32.gmra.mxu0 %v356
  %v485 = vpop.f32.mrf.mxu0
  %v486 = vadd.f32 %v293, %v485
  %v487 = vpop.f32.mrf.mxu0
  %488 = vmatprep.mubr.f32.mxu0 0.0
  %489 = vmatmul.mubr.f32.gmra.mxu0 %v359
  %v490 = vpop.f32.mrf.mxu0
  %v491 = vadd.f32 %v298, %v490
  %v492 = vpop.f32.mrf.mxu0
  %493 = vmatprep.mubr.f32.mxu0 0.0
  %494 = vmatmul.mubr.f32.gmra.mxu0 %v362
  %v495 = vpop.f32.mrf.mxu0
  %v496 = vadd.f32 %v303, %v495
  %v497 = vpop.f32.mrf.mxu0
  %498 = vmatprep.mubr.f32.mxu0 0.0
  %499 = vmatmul.mubr.f32.gmra.mxu0 %v365
  %v500 = vpop.f32.mrf.mxu0
  %v501 = vadd.f32 %v308, %v500
  %v502 = vpop.f32.mrf.mxu0
  %503 = vmatprep.mubr.f32.mxu0 0.0
  %504 = vmatmul.mubr.f32.gmra.mxu0 %v368
  %v505 = vpop.f32.mrf.mxu0
  %v506 = vadd.f32 %v313, %v505
  %v507 = vpop.f32.mrf.mxu0
  %508 = vmatprep.mubr.f32.mxu0 0.0
  %509 = vmatmul.mubr.f32.gmra.mxu0 %v371
  %v510 = vpop.f32.mrf.mxu0
  %v511 = vadd.f32 %v318, %v510
  %v512 = vpop.f32.mrf.mxu0
  %513 = vmatprep.mubr.f32.mxu0 0.0
  %514 = vmatmul.mubr.f32.gmra.mxu0 %v374
  %v515 = vpop.f32.mrf.mxu0
  %v516 = vadd.f32 %v323, %v515
  %v517 = vpop.f32.mrf.mxu0
  %518 = vmatprep.mubr.f32.mxu0 0.0
  %519 = vmatmul.mubr.f32.gmra.mxu0 %v377
  %v520 = vpop.f32.mrf.mxu0
  %v521 = vadd.f32 %v328, %v520
  %v522 = vpop.f32.mrf.mxu0
  %523 = vdwg.mxu0
  %v524 = vmax.f32 %v446, 0.0
  %v525 = vmax.f32 %v451, 0.0
  %v526 = vmax.f32 %v456, 0.0
  %v527 = vmax.f32 %v461, 0.0
  %v528 = vmax.f32 %v466, 0.0
  %v529 = vmax.f32 %v471, 0.0
  %v530 = vmax.f32 %v476, 0.0
  %v531 = vmax.f32 %v481, 0.0
  %v532 = vmax.f32 %v486, 0.0
  %v533 = vmax.f32 %v491, 0.0
  %v534 = vmax.f32 %v496, 0.0
  %v535 = vmax.f32 %v501, 0.0
  %v536 = vmax.f32 %v506, 0.0
  %v537 = vmax.f32 %v511, 0.0
  %v538 = vmax.f32 %v516, 0.0
  %v539 = vmax.f32 %v521, 0.0
  %v540 = vmax.f32 %v524, %v526
  %v541 = vmax.f32 %v525, %v527
  %v542 = vmax.f32 %v540, %v528
  %v543 = vmax.f32 %v541, %v529
  %v544 = vmax.f32 %v542, %v530
  %v545 = vmax.f32 %v543, %v531
  %v546 = vmax.f32 %v544, %v532
  %v547 = vmax.f32 %v545, %v533
  %v548 = vmax.f32 %v546, %v534
  %v549 = vmax.f32 %v547, %v535
  %v550 = vmax.f32 %v548, %v536
  %v551 = vmax.f32 %v549, %v537
  %v552 = vmax.f32 %v550, %v538
  %v553 = vmax.f32 %v551, %v539
  %554 = vst [vmem:[%s5] sm:$0xff] %v552
  %555 = vst [vmem:[%s5 + $0x8] sm:$0xff] %v553
  // Predicated region
  $region22: #{set_abstraction_forward.3} parent=0 // pred_check
    _
  $region23: #{set_abstraction_forward.3} parent=0 // pred_check_branch
    %557 = sbr.rel (0) target = $region25
  $region24: #{set_abstraction_forward.3} parent=0 // pred_region
    _
  $region25: #{set_abstraction_forward.3} parent=0 // pred_fallthru
    _
  // Predicated region
  $region26: #{set_abstraction_forward.3} parent=0 // pred_check
    _
  $region27: #{set_abstraction_forward.3} parent=0 // pred_check_branch
    %559 = sbr.rel (0) target = $region29
  $region28: #{set_abstraction_forward.3} parent=0 // pred_region
    _
  $region29: #{set_abstraction_forward.3} parent=0 // pred_fallthru
    _

// kernel: custom-call.21
$region0: #{custom-call.21}
  %s0 = inlined_call_operand.vmem [shape: f32[2,16], index: 0, kind: output, shape index: {}]

// kernel: set_abstraction_forward.4
$region0: #{set_abstraction_forward.4}
  #allocation0 [shape = 'u32[]', space=smem, size = 0x4, offset = 0x4, fixed_abs, tag = 'smem constant byte address 0x4 - core index']
  #allocation1 [shape = 'u32[144,128]{1,0:T(1,128)}', space=vmem, size = 0x12000, scoped, tag = 'internal scratch']
  %s0 = inlined_call_operand.vmem [shape: f32[64,128], index: 0, kind: input, shape index: {}]
  %s1 = inlined_call_operand.vmem [shape: f32[128,64], index: 1, kind: input, shape index: {}]
  %s2 = inlined_call_operand.vmem [shape: f32[128,1], index: 2, kind: input, shape index: {}]
  %s3 = inlined_call_operand.vmem [shape: f32[256,128], index: 3, kind: input, shape index: {}]
  %s4 = inlined_call_operand.vmem [shape: f32[256,1], index: 4, kind: input, shape index: {}]
  %s5 = inlined_call_operand.vmem [shape: f32[16,128], index: 5, kind: output, shape index: {}]
  %s6 = sld [smem:[#allocation0]]
  $region30: #{set_abstraction_forward.4} parent=0
    _
  %s8 = ssub.s32 1, %s6
  %s9 = scalar_select 0, %s8, %s6
  // Predicated region
  $region2: #{set_abstraction_forward.4} parent=0 // pred_check
    _
  $region3: #{set_abstraction_forward.4} parent=0 // pred_check_branch
    %11 = sbr.rel (0) target = $region5
  $region4: #{set_abstraction_forward.4} parent=0 // pred_region
    _
  $region5: #{set_abstraction_forward.4} parent=0 // pred_fallthru
    _
  // Predicated region
  $region6: #{set_abstraction_forward.4} parent=0 // pred_check
    _
  $region7: #{set_abstraction_forward.4} parent=0 // pred_check_branch
    %13 = sbr.rel (0) target = $region9
  $region8: #{set_abstraction_forward.4} parent=0 // pred_region
    _
  $region9: #{set_abstraction_forward.4} parent=0 // pred_fallthru
    _
  // Predicated region
  $region10: #{set_abstraction_forward.4} parent=0 // pred_check
    _
  $region11: #{set_abstraction_forward.4} parent=0 // pred_check_branch
    %15 = sbr.rel (0) target = $region13
  $region12: #{set_abstraction_forward.4} parent=0 // pred_region
    _
  $region13: #{set_abstraction_forward.4} parent=0 // pred_fallthru
    _
  // Predicated region
  $region14: #{set_abstraction_forward.4} parent=0 // pred_check
    _
  $region15: #{set_abstraction_forward.4} parent=0 // pred_check_branch
    %17 = sbr.rel (0) target = $region17
  $region16: #{set_abstraction_forward.4} parent=0 // pred_region
    _
  $region17: #{set_abstraction_forward.4} parent=0 // pred_fallthru
    _
  // Predicated region
  $region18: #{set_abstraction_forward.4} parent=0 // pred_check
    _
  $region19: #{set_abstraction_forward.4} parent=0 // pred_check_branch
    %19 = sbr.rel (0) target = $region21
  $region20: #{set_abstraction_forward.4} parent=0 // pred_region
    _
  $region21: #{set_abstraction_forward.4} parent=0 // pred_fallthru
    _
  %v20 = vld [vmem:[%s0] sm:$0xff]
  %v21 = vld [vmem:[%s0 + $0x8] sm:$0xff]
  %v22 = vld [vmem:[%s0 + $0x10] sm:$0xff]
  %v23 = vld [vmem:[%s0 + $0x18] sm:$0xff]
  %v24 = vld [vmem:[%s0 + $0x20] sm:$0xff]
  %v25 = vld [vmem:[%s0 + $0x28] sm:$0xff]
  %v26 = vld [vmem:[%s0 + $0x30] sm:$0xff]
  %v27 = vld [vmem:[%s0 + $0x38] sm:$0xff]
  %v28 = vld [vmem:[%s1] sm:$0xff]
  %v29 = vld [vmem:[%s1 + $0x8] sm:$0xff]
  %v30 = vld [vmem:[%s1 + $0x10] sm:$0xff]
  %v31 = vld [vmem:[%s1 + $0x18] sm:$0xff]
  %v32 = vld [vmem:[%s1 + $0x20] sm:$0xff]
  %v33 = vld [vmem:[%s1 + $0x28] sm:$0xff]
  %v34 = vld [vmem:[%s1 + $0x30] sm:$0xff]
  %v35 = vld [vmem:[%s1 + $0x38] sm:$0xff]
  %v36 = vld [vmem:[%s1 + $0x40] sm:$0xff]
  %v37 = vld [vmem:[%s1 + $0x48] sm:$0xff]
  %v38 = vld [vmem:[%s1 + $0x50] sm:$0xff]
  %v39 = vld [vmem:[%s1 + $0x58] sm:$0xff]
  %v40 = vld [vmem:[%s1 + $0x60] sm:$0xff]
  %v41 = vld [vmem:[%s1 + $0x68] sm:$0xff]
  %v42 = vld [vmem:[%s1 + $0x70] sm:$0xff]
  %v43 = vld [vmem:[%s1 + $0x78] sm:$0xff]
  %v44 = vld [vmem:[%s2] sm:$0xff]
  %v45 = vld [vmem:[%s2 + $0x8] sm:$0xff]
  %v46 = vld [vmem:[%s2 + $0x10] sm:$0xff]
  %v47 = vld [vmem:[%s2 + $0x18] sm:$0xff]
  %v48 = vld [vmem:[%s2 + $0x20] sm:$0xff]
  %v49 = vld [vmem:[%s2 + $0x28] sm:$0xff]
  %v50 = vld [vmem:[%s2 + $0x30] sm:$0xff]
  %v51 = vld [vmem:[%s2 + $0x38] sm:$0xff]
  %v52 = vld [vmem:[%s2 + $0x40] sm:$0xff]
  %v53 = vld [vmem:[%s2 + $0x48] sm:$0xff]
  %v54 = vld [vmem:[%s2 + $0x50] sm:$0xff]
  %v55 = vld [vmem:[%s2 + $0x58] sm:$0xff]
  %v56 = vld [vmem:[%s2 + $0x60] sm:$0xff]
  %v57 = vld [vmem:[%s2 + $0x68] sm:$0xff]
  %v58 = vld [vmem:[%s2 + $0x70] sm:$0xff]
  %v59 = vld [vmem:[%s2 + $0x78] sm:$0xff]
  %61 = vset.pattern.permute.xlu0 0
  %62 = vperm.xlu0 %61, %v44
  %v63 = vpop.permute.xlu0 %62
  %66 = vset.pattern.permute.xlu0 0
  %67 = vperm.xlu0 %66, %v45
  %v68 = vpop.permute.xlu0 %67
  %71 = vset.pattern.permute.xlu0 0
  %72 = vperm.xlu0 %71, %v46
  %v73 = vpop.permute.xlu0 %72
  %76 = vset.pattern.permute.xlu0 0
  %77 = vperm.xlu0 %76, %v47
  %v78 = vpop.permute.xlu0 %77
  %81 = vset.pattern.permute.xlu0 0
  %82 = vperm.xlu0 %81, %v48
  %v83 = vpop.permute.xlu0 %82
  %86 = vset.pattern.permute.xlu0 0
  %87 = vperm.xlu0 %86, %v49
  %v88 = vpop.permute.xlu0 %87
  %91 = vset.pattern.permute.xlu0 0
  %92 = vperm.xlu0 %91, %v50
  %v93 = vpop.permute.xlu0 %92
  %96 = vset.pattern.permute.xlu0 0
  %97 = vperm.xlu0 %96, %v51
  %v98 = vpop.permute.xlu0 %97
  %101 = vset.pattern.permute.xlu0 0
  %102 = vperm.xlu0 %101, %v52
  %v103 = vpop.permute.xlu0 %102
  %106 = vset.pattern.permute.xlu0 0
  %107 = vperm.xlu0 %106, %v53
  %v108 = vpop.permute.xlu0 %107
  %111 = vset.pattern.permute.xlu0 0
  %112 = vperm.xlu0 %111, %v54
  %v113 = vpop.permute.xlu0 %112
  %116 = vset.pattern.permute.xlu0 0
  %117 = vperm.xlu0 %116, %v55
  %v118 = vpop.permute.xlu0 %117
  %121 = vset.pattern.permute.xlu0 0
  %122 = vperm.xlu0 %121, %v56
  %v123 = vpop.permute.xlu0 %122
  %126 = vset.pattern.permute.xlu0 0
  %127 = vperm.xlu0 %126, %v57
  %v128 = vpop.permute.xlu0 %127
  %131 = vset.pattern.permute.xlu0 0
  %132 = vperm.xlu0 %131, %v58
  %v133 = vpop.permute.xlu0 %132
  %136 = vset.pattern.permute.xlu0 0
  %137 = vperm.xlu0 %136, %v59
  %v138 = vpop.permute.xlu0 %137
  %vm140 = vcmask 523264
  %v142 = vsel %vm140, %v28, 0
  %v145 = vsel %vm140, %v29, 0
  %v148 = vsel %vm140, %v30, 0
  %v151 = vsel %vm140, %v31, 0
  %v154 = vsel %vm140, %v32, 0
  %v157 = vsel %vm140, %v33, 0
  %v160 = vsel %vm140, %v34, 0
  %v163 = vsel %vm140, %v35, 0
  %v166 = vsel %vm140, %v36, 0
  %v169 = vsel %vm140, %v37, 0
  %v172 = vsel %vm140, %v38, 0
  %v175 = vsel %vm140, %v39, 0
  %v178 = vsel %vm140, %v40, 0
  %v181 = vsel %vm140, %v41, 0
  %v184 = vsel %vm140, %v42, 0
  %v187 = vsel %vm140, %v43, 0
  %189 = vmatprep.subr.mxu0 0.0
  %190 = vmatpush1.msra.mxu0 0.0
  %191 = vmatprep.subr.mxu0 0.0
  %192 = vmatpush1.msra.mxu0 0.0
  %193 = vmatprep.subr.mxu0 0.0
  %194 = vmatpush1.msra.mxu0 0.0
  %195 = vmatprep.subr.mxu0 0.0
  %196 = vmatpush1.msra.mxu0 0.0
  %197 = vmatprep.subr.mxu0 0.0
  %198 = vmatpush1.msra.mxu0 0.0
  %199 = vmatprep.subr.mxu0 0.0
  %200 = vmatpush1.msra.mxu0 0.0
  %201 = vmatprep.subr.mxu0 0.0
  %202 = vmatpush1.msra.mxu0 0.0
  %203 = vmatprep.subr.mxu0 0.0
  %204 = vmatpush1.msra.mxu0 0.0
  %205 = vmatprep.subr.mxu0 0.0
  %206 = vmatpush1.msra.mxu0 %v27
  %207 = vmatprep.subr.mxu0 0.0
  %208 = vmatpush1.msra.mxu0 %v26
  %209 = vmatprep.subr.mxu0 0.0
  %210 = vmatpush1.msra.mxu0 %v25
  %211 = vmatprep.subr.mxu0 0.0
  %212 = vmatpush1.msra.mxu0 %v24
  %213 = vmatprep.subr.mxu0 0.0
  %214 = vmatpush1.msra.mxu0 %v23
  %215 = vmatprep.subr.mxu0 0.0
  %216 = vmatpush1.msra.mxu0 %v22
  %217 = vmatprep.subr.mxu0 0.0
  %218 = vmatpush1.msra.mxu0 %v21
  %219 = vmatprep.subr.mxu0 0.0
  %220 = vmatpush1.msra.mxu0 %v20
  %221 = vmatprep.subr.mxu0 0.0
  %222 = vmatpush2.msra.mxu0 0.0
  %223 = vmatprep.subr.mxu0 0.0
  %224 = vmatpush2.msra.mxu0 0.0
  %225 = vmatprep.subr.mxu0 0.0
  %226 = vmatpush2.msra.mxu0 0.0
  %227 = vmatprep.subr.mxu0 0.0
  %228 = vmatpush2.msra.mxu0 0.0
  %229 = vmatprep.subr.mxu0 0.0
  %230 = vmatpush2.msra.mxu0 0.0
  %231 = vmatprep.subr.mxu0 0.0
  %232 = vmatpush2.msra.mxu0 0.0
  %233 = vmatprep.subr.mxu0 0.0
  %234 = vmatpush2.msra.mxu0 0.0
  %235 = vmatprep.subr.mxu0 0.0
  %236 = vmatpush2.msra.mxu0 0.0
  %237 = vmatprep.subr.mxu0 0.0
  %238 = vmatpush2.msra.mxu0 0.0
  %239 = vmatprep.subr.mxu0 0.0
  %240 = vmatpush2.msra.mxu0 0.0
  %241 = vmatprep.subr.mxu0 0.0
  %242 = vmatpush2.msra.mxu0 0.0
  %243 = vmatprep.subr.mxu0 0.0
  %244 = vmatpush2.msra.mxu0 0.0
  %245 = vmatprep.subr.mxu0 0.0
  %246 = vmatpush2.msra.mxu0 0.0
  %247 = vmatprep.subr.mxu0 0.0
  %248 = vmatpush2.msra.mxu0 0.0
  %249 = vmatprep.subr.mxu0 0.0
  %250 = vmatpush2.msra.mxu0 0.0
  %251 = vmatprep.subr.mxu0 0.0
  %252 = vmatpush2.msra.mxu0 0.0
  %253 = vmatprep.mubr.f32.mxu0 0.0
  %254 = vmatmul.mubr.f32.gmra.mxu0 %v142
  %v255 = vpop.f32.mrf.mxu0
  %v256 = vadd.f32 %v63, %v255
  %v257 = vpop.f32.mrf.mxu0
  %258 = vmatprep.mubr.f32.mxu0 0.0
  %259 = vmatmul.mubr.f32.gmra.mxu0 %v145
  %v260 = vpop.f32.mrf.mxu0
  %v261 = vadd.f32 %v68, %v260
  %v262 = vpop.f32.mrf.mxu0
  %263 = vmatprep.mubr.f32.mxu0 0.0
  %264 = vmatmul.mubr.f32.gmra.mxu0 %v148
  %v265 = vpop.f32.mrf.mxu0
  %v266 = vadd.f32 %v73, %v265
  %v267 = vpop.f32.mrf.mxu0
  %268 = vmatprep.mubr.f32.mxu0 0.0
  %269 = vmatmul.mubr.f32.gmra.mxu0 %v151
  %v270 = vpop.f32.mrf.mxu0
  %v271 = vadd.f32 %v78, %v270
  %v272 = vpop.f32.mrf.mxu0
  %273 = vmatprep.mubr.f32.mxu0 0.0
  %274 = vmatmul.mubr.f32.gmra.mxu0 %v154
  %v275 = vpop.f32.mrf.mxu0
  %v276 = vadd.f32 %v83, %v275
  %v277 = vpop.f32.mrf.mxu0
  %278 = vmatprep.mubr.f32.mxu0 0.0
  %279 = vmatmul.mubr.f32.gmra.mxu0 %v157
  %v280 = vpop.f32.mrf.mxu0
  %v281 = vadd.f32 %v88, %v280
  %v282 = vpop.f32.mrf.mxu0
  %283 = vmatprep.mubr.f32.mxu0 0.0
  %284 = vmatmul.mubr.f32.gmra.mxu0 %v160
  %v285 = vpop.f32.mrf.mxu0
  %v286 = vadd.f32 %v93, %v285
  %v287 = vpop.f32.mrf.mxu0
  %288 = vmatprep.mubr.f32.mxu0 0.0
  %289 = vmatmul.mubr.f32.gmra.mxu0 %v163
  %v290 = vpop.f32.mrf.mxu0
  %v291 = vadd.f32 %v98, %v290
  %v292 = vpop.f32.mrf.mxu0
  %293 = vmatprep.mubr.f32.mxu0 0.0
  %294 = vmatmul.mubr.f32.gmra.mxu0 %v166
  %v295 = vpop.f32.mrf.mxu0
  %v296 = vadd.f32 %v103, %v295
  %v297 = vpop.f32.mrf.mxu0
  %298 = vmatprep.mubr.f32.mxu0 0.0
  %299 = vmatmul.mubr.f32.gmra.mxu0 %v169
  %v300 = vpop.f32.mrf.mxu0
  %v301 = vadd.f32 %v108, %v300
  %v302 = vpop.f32.mrf.mxu0
  %303 = vmatprep.mubr.f32.mxu0 0.0
  %304 = vmatmul.mubr.f32.gmra.mxu0 %v172
  %v305 = vpop.f32.mrf.mxu0
  %v306 = vadd.f32 %v113, %v305
  %v307 = vpop.f32.mrf.mxu0
  %308 = vmatprep.mubr.f32.mxu0 0.0
  %309 = vmatmul.mubr.f32.gmra.mxu0 %v175
  %v310 = vpop.f32.mrf.mxu0
  %v311 = vadd.f32 %v118, %v310
  %v312 = vpop.f32.mrf.mxu0
  %313 = vmatprep.mubr.f32.mxu0 0.0
  %314 = vmatmul.mubr.f32.gmra.mxu0 %v178
  %v315 = vpop.f32.mrf.mxu0
  %v316 = vadd.f32 %v123, %v315
  %v317 = vpop.f32.mrf.mxu0
  %318 = vmatprep.mubr.f32.mxu0 0.0
  %319 = vmatmul.mubr.f32.gmra.mxu0 %v181
  %v320 = vpop.f32.mrf.mxu0
  %v321 = vadd.f32 %v128, %v320
  %v322 = vpop.f32.mrf.mxu0
  %323 = vmatprep.mubr.f32.mxu0 0.0
  %324 = vmatmul.mubr.f32.gmra.mxu0 %v184
  %v325 = vpop.f32.mrf.mxu0
  %v326 = vadd.f32 %v133, %v325
  %v327 = vpop.f32.mrf.mxu0
  %328 = vmatprep.mubr.f32.mxu0 0.0
  %329 = vmatmul.mubr.f32.gmra.mxu0 %v187
  %v330 = vpop.f32.mrf.mxu0
  %v331 = vadd.f32 %v138, %v330
  %v332 = vpop.f32.mrf.mxu0
  %333 = vdwg.mxu0
  %v334 = vmax.f32 %v256, 0.0
  %v335 = vmax.f32 %v261, 0.0
  %v336 = vmax.f32 %v266, 0.0
  %v337 = vmax.f32 %v271, 0.0
  %v338 = vmax.f32 %v276, 0.0
  %v339 = vmax.f32 %v281, 0.0
  %v340 = vmax.f32 %v286, 0.0
  %v341 = vmax.f32 %v291, 0.0
  %v342 = vmax.f32 %v296, 0.0
  %v343 = vmax.f32 %v301, 0.0
  %v344 = vmax.f32 %v306, 0.0
  %v345 = vmax.f32 %v311, 0.0
  %v346 = vmax.f32 %v316, 0.0
  %v347 = vmax.f32 %v321, 0.0
  %v348 = vmax.f32 %v326, 0.0
  %v349 = vmax.f32 %v331, 0.0
  %v350 = vld [vmem:[%s3] sm:$0xff]
  %v351 = vld [vmem:[%s3 + $0x8] sm:$0xff]
  %v352 = vld [vmem:[%s3 + $0x10] sm:$0xff]
  %v353 = vld [vmem:[%s3 + $0x18] sm:$0xff]
  %v354 = vld [vmem:[%s3 + $0x20] sm:$0xff]
  %v355 = vld [vmem:[%s3 + $0x28] sm:$0xff]
  %v356 = vld [vmem:[%s3 + $0x30] sm:$0xff]
  %v357 = vld [vmem:[%s3 + $0x38] sm:$0xff]
  %v358 = vld [vmem:[%s3 + $0x40] sm:$0xff]
  %v359 = vld [vmem:[%s3 + $0x48] sm:$0xff]
  %v360 = vld [vmem:[%s3 + $0x50] sm:$0xff]
  %v361 = vld [vmem:[%s3 + $0x58] sm:$0xff]
  %v362 = vld [vmem:[%s3 + $0x60] sm:$0xff]
  %v363 = vld [vmem:[%s3 + $0x68] sm:$0xff]
  %v364 = vld [vmem:[%s3 + $0x70] sm:$0xff]
  %v365 = vld [vmem:[%s3 + $0x78] sm:$0xff]
  %v366 = vld [vmem:[%s3 + $0x80] sm:$0xff]
  %v367 = vld [vmem:[%s3 + $0x88] sm:$0xff]
  %v368 = vld [vmem:[%s3 + $0x90] sm:$0xff]
  %v369 = vld [vmem:[%s3 + $0x98] sm:$0xff]
  %v370 = vld [vmem:[%s3 + $0xa0] sm:$0xff]
  %v371 = vld [vmem:[%s3 + $0xa8] sm:$0xff]
  %v372 = vld [vmem:[%s3 + $0xb0] sm:$0xff]
  %v373 = vld [vmem:[%s3 + $0xb8] sm:$0xff]
  %v374 = vld [vmem:[%s3 + $0xc0] sm:$0xff]
  %v375 = vld [vmem:[%s3 + $0xc8] sm:$0xff]
  %v376 = vld [vmem:[%s3 + $0xd0] sm:$0xff]
  %v377 = vld [vmem:[%s3 + $0xd8] sm:$0xff]
  %v378 = vld [vmem:[%s3 + $0xe0] sm:$0xff]
  %v379 = vld [vmem:[%s3 + $0xe8] sm:$0xff]
  %v380 = vld [vmem:[%s3 + $0xf0] sm:$0xff]
  %v381 = vld [vmem:[%s3 + $0xf8] sm:$0xff]
  %v382 = vld [vmem:[%s4] sm:$0xff]
  %v383 = vld [vmem:[%s4 + $0x8] sm:$0xff]
  %v384 = vld [vmem:[%s4 + $0x10] sm:$0xff]
  %v385 = vld [vmem:[%s4 + $0x18] sm:$0xff]
  %v386 = vld [vmem:[%s4 + $0x20] sm:$0xff]
  %v387 = vld [vmem:[%s4 + $0x28] sm:$0xff]
  %v388 = vld [vmem:[%s4 + $0x30] sm:$0xff]
  %v389 = vld [vmem:[%s4 + $0x38] sm:$0xff]
  %v390 = vld [vmem:[%s4 + $0x40] sm:$0xff]
  %v391 = vld [vmem:[%s4 + $0x48] sm:$0xff]
  %v392 = vld [vmem:[%s4 + $0x50] sm:$0xff]
  %v393 = vld [vmem:[%s4 + $0x58] sm:$0xff]
  %v394 = vld [vmem:[%s4 + $0x60] sm:$0xff]
  %v395 = vld [vmem:[%s4 + $0x68] sm:$0xff]
  %v396 = vld [vmem:[%s4 + $0x70] sm:$0xff]
  %v397 = vld [vmem:[%s4 + $0x78] sm:$0xff]
  %v398 = vld [vmem:[%s4 + $0x80] sm:$0xff]
  %v399 = vld [vmem:[%s4 + $0x88] sm:$0xff]
  %v400 = vld [vmem:[%s4 + $0x90] sm:$0xff]
  %v401 = vld [vmem:[%s4 + $0x98] sm:$0xff]
  %v402 = vld [vmem:[%s4 + $0xa0] sm:$0xff]
  %v403 = vld [vmem:[%s4 + $0xa8] sm:$0xff]
  %v404 = vld [vmem:[%s4 + $0xb0] sm:$0xff]
  %v405 = vld [vmem:[%s4 + $0xb8] sm:$0xff]
  %v406 = vld [vmem:[%s4 + $0xc0] sm:$0xff]
  %v407 = vld [vmem:[%s4 + $0xc8] sm:$0xff]
  %v408 = vld [vmem:[%s4 + $0xd0] sm:$0xff]
  %v409 = vld [vmem:[%s4 + $0xd8] sm:$0xff]
  %v410 = vld [vmem:[%s4 + $0xe0] sm:$0xff]
  %v411 = vld [vmem:[%s4 + $0xe8] sm:$0xff]
  %v412 = vld [vmem:[%s4 + $0xf0] sm:$0xff]
  %v413 = vld [vmem:[%s4 + $0xf8] sm:$0xff]
  %415 = vset.pattern.permute.xlu0 0
  %416 = vperm.xlu0 %415, %v382
  %v417 = vpop.permute.xlu0 %416
  %420 = vset.pattern.permute.xlu0 0
  %421 = vperm.xlu0 %420, %v383
  %v422 = vpop.permute.xlu0 %421
  %425 = vset.pattern.permute.xlu0 0
  %426 = vperm.xlu0 %425, %v384
  %v427 = vpop.permute.xlu0 %426
  %430 = vset.pattern.permute.xlu0 0
  %431 = vperm.xlu0 %430, %v385
  %v432 = vpop.permute.xlu0 %431
  %435 = vset.pattern.permute.xlu0 0
  %436 = vperm.xlu0 %435, %v386
  %v437 = vpop.permute.xlu0 %436
  %440 = vset.pattern.permute.xlu0 0
  %441 = vperm.xlu0 %440, %v387
  %v442 = vpop.permute.xlu0 %441
  %445 = vset.pattern.permute.xlu0 0
  %446 = vperm.xlu0 %445, %v388
  %v447 = vpop.permute.xlu0 %446
  %450 = vset.pattern.permute.xlu0 0
  %451 = vperm.xlu0 %450, %v389
  %v452 = vpop.permute.xlu0 %451
  %455 = vset.pattern.permute.xlu0 0
  %456 = vperm.xlu0 %455, %v390
  %v457 = vpop.permute.xlu0 %456
  %460 = vset.pattern.permute.xlu0 0
  %461 = vperm.xlu0 %460, %v391
  %v462 = vpop.permute.xlu0 %461
  %465 = vset.pattern.permute.xlu0 0
  %466 = vperm.xlu0 %465, %v392
  %v467 = vpop.permute.xlu0 %466
  %470 = vset.pattern.permute.xlu0 0
  %471 = vperm.xlu0 %470, %v393
  %v472 = vpop.permute.xlu0 %471
  %475 = vset.pattern.permute.xlu0 0
  %476 = vperm.xlu0 %475, %v394
  %v477 = vpop.permute.xlu0 %476
  %480 = vset.pattern.permute.xlu0 0
  %481 = vperm.xlu0 %480, %v395
  %v482 = vpop.permute.xlu0 %481
  %485 = vset.pattern.permute.xlu0 0
  %486 = vperm.xlu0 %485, %v396
  %v487 = vpop.permute.xlu0 %486
  %490 = vset.pattern.permute.xlu0 0
  %491 = vperm.xlu0 %490, %v397
  %v492 = vpop.permute.xlu0 %491
  %495 = vset.pattern.permute.xlu0 0
  %496 = vperm.xlu0 %495, %v398
  %v497 = vpop.permute.xlu0 %496
  %500 = vset.pattern.permute.xlu0 0
  %501 = vperm.xlu0 %500, %v399
  %v502 = vpop.permute.xlu0 %501
  %505 = vset.pattern.permute.xlu0 0
  %506 = vperm.xlu0 %505, %v400
  %v507 = vpop.permute.xlu0 %506
  %510 = vset.pattern.permute.xlu0 0
  %511 = vperm.xlu0 %510, %v401
  %v512 = vpop.permute.xlu0 %511
  %515 = vset.pattern.permute.xlu0 0
  %516 = vperm.xlu0 %515, %v402
  %v517 = vpop.permute.xlu0 %516
  %520 = vset.pattern.permute.xlu0 0
  %521 = vperm.xlu0 %520, %v403
  %v522 = vpop.permute.xlu0 %521
  %525 = vset.pattern.permute.xlu0 0
  %526 = vperm.xlu0 %525, %v404
  %v527 = vpop.permute.xlu0 %526
  %530 = vset.pattern.permute.xlu0 0
  %531 = vperm.xlu0 %530, %v405
  %v532 = vpop.permute.xlu0 %531
  %535 = vset.pattern.permute.xlu0 0
  %536 = vperm.xlu0 %535, %v406
  %v537 = vpop.permute.xlu0 %536
  %540 = vset.pattern.permute.xlu0 0
  %541 = vperm.xlu0 %540, %v407
  %v542 = vpop.permute.xlu0 %541
  %545 = vset.pattern.permute.xlu0 0
  %546 = vperm.xlu0 %545, %v408
  %v547 = vpop.permute.xlu0 %546
  %550 = vset.pattern.permute.xlu0 0
  %551 = vperm.xlu0 %550, %v409
  %v552 = vpop.permute.xlu0 %551
  %555 = vset.pattern.permute.xlu0 0
  %556 = vperm.xlu0 %555, %v410
  %v557 = vpop.permute.xlu0 %556
  %560 = vset.pattern.permute.xlu0 0
  %561 = vperm.xlu0 %560, %v411
  %v562 = vpop.permute.xlu0 %561
  %565 = vset.pattern.permute.xlu0 0
  %566 = vperm.xlu0 %565, %v412
  %v567 = vpop.permute.xlu0 %566
  %570 = vset.pattern.permute.xlu0 0
  %571 = vperm.xlu0 %570, %v413
  %v572 = vpop.permute.xlu0 %571
  %574 = vmatprep.subr.mxu0 0.0
  %575 = vmatpush1.msra.mxu0 %v349
  %576 = vmatprep.subr.mxu0 0.0
  %577 = vmatpush1.msra.mxu0 %v348
  %578 = vmatprep.subr.mxu0 0.0
  %579 = vmatpush1.msra.mxu0 %v347
  %580 = vmatprep.subr.mxu0 0.0
  %581 = vmatpush1.msra.mxu0 %v346
  %582 = vmatprep.subr.mxu0 0.0
  %583 = vmatpush1.msra.mxu0 %v345
  %584 = vmatprep.subr.mxu0 0.0
  %585 = vmatpush1.msra.mxu0 %v344
  %586 = vmatprep.subr.mxu0 0.0
  %587 = vmatpush1.msra.mxu0 %v343
  %588 = vmatprep.subr.mxu0 0.0
  %589 = vmatpush1.msra.mxu0 %v342
  %590 = vmatprep.subr.mxu0 0.0
  %591 = vmatpush1.msra.mxu0 %v341
  %592 = vmatprep.subr.mxu0 0.0
  %593 = vmatpush1.msra.mxu0 %v340
  %594 = vmatprep.subr.mxu0 0.0
  %595 = vmatpush1.msra.mxu0 %v339
  %596 = vmatprep.subr.mxu0 0.0
  %597 = vmatpush1.msra.mxu0 %v338
  %598 = vmatprep.subr.mxu0 0.0
  %599 = vmatpush1.msra.mxu0 %v337
  %600 = vmatprep.subr.mxu0 0.0
  %601 = vmatpush1.msra.mxu0 %v336
  %602 = vmatprep.subr.mxu0 0.0
  %603 = vmatpush1.msra.mxu0 %v335
  %604 = vmatprep.subr.mxu0 0.0
  %605 = vmatpush1.msra.mxu0 %v334
  %606 = vmatprep.subr.mxu0 0.0
  %607 = vmatpush2.msra.mxu0 0.0
  %608 = vmatprep.subr.mxu0 0.0
  %609 = vmatpush2.msra.mxu0 0.0
  %610 = vmatprep.subr.mxu0 0.0
  %611 = vmatpush2.msra.mxu0 0.0
  %612 = vmatprep.subr.mxu0 0.0
  %613 = vmatpush2.msra.mxu0 0.0
  %614 = vmatprep.subr.mxu0 0.0
  %615 = vmatpush2.msra.mxu0 0.0
  %616 = vmatprep.subr.mxu0 0.0
  %617 = vmatpush2.msra.mxu0 0.0
  %618 = vmatprep.subr.mxu0 0.0
  %619 = vmatpush2.msra.mxu0 0.0
  %620 = vmatprep.subr.mxu0 0.0
  %621 = vmatpush2.msra.mxu0 0.0
  %622 = vmatprep.subr.mxu0 0.0
  %623 = vmatpush2.msra.mxu0 0.0
  %624 = vmatprep.subr.mxu0 0.0
  %625 = vmatpush2.msra.mxu0 0.0
  %626 = vmatprep.subr.mxu0 0.0
  %627 = vmatpush2.msra.mxu0 0.0
  %628 = vmatprep.subr.mxu0 0.0
  %629 = vmatpush2.msra.mxu0 0.0
  %630 = vmatprep.subr.mxu0 0.0
  %631 = vmatpush2.msra.mxu0 0.0
  %632 = vmatprep.subr.mxu0 0.0
  %633 = vmatpush2.msra.mxu0 0.0
  %634 = vmatprep.subr.mxu0 0.0
  %635 = vmatpush2.msra.mxu0 0.0
  %636 = vmatprep.subr.mxu0 0.0
  %637 = vmatpush2.msra.mxu0 0.0
  %638 = vmatprep.mubr.f32.mxu0 0.0
  %639 = vmatmul.mubr.f32.gmra.mxu0 %v350
  %v640 = vpop.f32.mrf.mxu0
  %v641 = vadd.f32 %v417, %v640
  %v642 = vpop.f32.mrf.mxu0
  %643 = vmatprep.mubr.f32.mxu0 0.0
  %644 = vmatmul.mubr.f32.gmra.mxu0 %v351
  %v645 = vpop.f32.mrf.mxu0
  %v646 = vadd.f32 %v422, %v645
  %v647 = vpop.f32.mrf.mxu0
  %648 = vmatprep.mubr.f32.mxu0 0.0
  %649 = vmatmul.mubr.f32.gmra.mxu0 %v352
  %v650 = vpop.f32.mrf.mxu0
  %v651 = vadd.f32 %v427, %v650
  %v652 = vpop.f32.mrf.mxu0
  %653 = vmatprep.mubr.f32.mxu0 0.0
  %654 = vmatmul.mubr.f32.gmra.mxu0 %v353
  %v655 = vpop.f32.mrf.mxu0
  %v656 = vadd.f32 %v432, %v655
  %v657 = vpop.f32.mrf.mxu0
  %658 = vmatprep.mubr.f32.mxu0 0.0
  %659 = vmatmul.mubr.f32.gmra.mxu0 %v354
  %v660 = vpop.f32.mrf.mxu0
  %v661 = vadd.f32 %v437, %v660
  %v662 = vpop.f32.mrf.mxu0
  %663 = vmatprep.mubr.f32.mxu0 0.0
  %664 = vmatmul.mubr.f32.gmra.mxu0 %v355
  %v665 = vpop.f32.mrf.mxu0
  %v666 = vadd.f32 %v442, %v665
  %v667 = vpop.f32.mrf.mxu0
  %668 = vmatprep.mubr.f32.mxu0 0.0
  %669 = vmatmul.mubr.f32.gmra.mxu0 %v356
  %v670 = vpop.f32.mrf.mxu0
  %v671 = vadd.f32 %v447, %v670
  %v672 = vpop.f32.mrf.mxu0
  %673 = vmatprep.mubr.f32.mxu0 0.0
  %674 = vmatmul.mubr.f32.gmra.mxu0 %v357
  %v675 = vpop.f32.mrf.mxu0
  %v676 = vadd.f32 %v452, %v675
  %v677 = vpop.f32.mrf.mxu0
  %678 = vmatprep.mubr.f32.mxu0 0.0
  %679 = vmatmul.mubr.f32.gmra.mxu0 %v358
  %v680 = vpop.f32.mrf.mxu0
  %v681 = vadd.f32 %v457, %v680
  %v682 = vpop.f32.mrf.mxu0
  %683 = vmatprep.mubr.f32.mxu0 0.0
  %684 = vmatmul.mubr.f32.gmra.mxu0 %v359
  %v685 = vpop.f32.mrf.mxu0
  %v686 = vadd.f32 %v462, %v685
  %v687 = vpop.f32.mrf.mxu0
  %688 = vmatprep.mubr.f32.mxu0 0.0
  %689 = vmatmul.mubr.f32.gmra.mxu0 %v360
  %v690 = vpop.f32.mrf.mxu0
  %v691 = vadd.f32 %v467, %v690
  %v692 = vpop.f32.mrf.mxu0
  %693 = vmatprep.mubr.f32.mxu0 0.0
  %694 = vmatmul.mubr.f32.gmra.mxu0 %v361
  %v695 = vpop.f32.mrf.mxu0
  %v696 = vadd.f32 %v472, %v695
  %v697 = vpop.f32.mrf.mxu0
  %698 = vmatprep.mubr.f32.mxu0 0.0
  %699 = vmatmul.mubr.f32.gmra.mxu0 %v362
  %v700 = vpop.f32.mrf.mxu0
  %v701 = vadd.f32 %v477, %v700
  %v702 = vpop.f32.mrf.mxu0
  %703 = vmatprep.mubr.f32.mxu0 0.0
  %704 = vmatmul.mubr.f32.gmra.mxu0 %v363
  %v705 = vpop.f32.mrf.mxu0
  %v706 = vadd.f32 %v482, %v705
  %v707 = vpop.f32.mrf.mxu0
  %708 = vmatprep.mubr.f32.mxu0 0.0
  %709 = vmatmul.mubr.f32.gmra.mxu0 %v364
  %v710 = vpop.f32.mrf.mxu0
  %v711 = vadd.f32 %v487, %v710
  %v712 = vpop.f32.mrf.mxu0
  %713 = vmatprep.mubr.f32.mxu0 0.0
  %714 = vmatmul.mubr.f32.gmra.mxu0 %v365
  %v715 = vpop.f32.mrf.mxu0
  %v716 = vadd.f32 %v492, %v715
  %v717 = vpop.f32.mrf.mxu0
  %718 = vmatprep.mubr.f32.mxu0 0.0
  %719 = vmatmul.mubr.f32.gmra.mxu0 %v366
  %v720 = vpop.f32.mrf.mxu0
  %v721 = vadd.f32 %v497, %v720
  %v722 = vpop.f32.mrf.mxu0
  %723 = vmatprep.mubr.f32.mxu0 0.0
  %724 = vmatmul.mubr.f32.gmra.mxu0 %v367
  %v725 = vpop.f32.mrf.mxu0
  %v726 = vadd.f32 %v502, %v725
  %v727 = vpop.f32.mrf.mxu0
  %728 = vmatprep.mubr.f32.mxu0 0.0
  %729 = vmatmul.mubr.f32.gmra.mxu0 %v368
  %v730 = vpop.f32.mrf.mxu0
  %v731 = vadd.f32 %v507, %v730
  %v732 = vpop.f32.mrf.mxu0
  %733 = vmatprep.mubr.f32.mxu0 0.0
  %734 = vmatmul.mubr.f32.gmra.mxu0 %v369
  %v735 = vpop.f32.mrf.mxu0
  %v736 = vadd.f32 %v512, %v735
  %v737 = vpop.f32.mrf.mxu0
  %738 = vmatprep.mubr.f32.mxu0 0.0
  %739 = vmatmul.mubr.f32.gmra.mxu0 %v370
  %v740 = vpop.f32.mrf.mxu0
  %v741 = vadd.f32 %v517, %v740
  %v742 = vpop.f32.mrf.mxu0
  %743 = vmatprep.mubr.f32.mxu0 0.0
  %744 = vmatmul.mubr.f32.gmra.mxu0 %v371
  %v745 = vpop.f32.mrf.mxu0
  %v746 = vadd.f32 %v522, %v745
  %v747 = vpop.f32.mrf.mxu0
  %748 = vmatprep.mubr.f32.mxu0 0.0
  %749 = vmatmul.mubr.f32.gmra.mxu0 %v372
  %v750 = vpop.f32.mrf.mxu0
  %v751 = vadd.f32 %v527, %v750
  %v752 = vpop.f32.mrf.mxu0
  %753 = vmatprep.mubr.f32.mxu0 0.0
  %754 = vmatmul.mubr.f32.gmra.mxu0 %v373
  %v755 = vpop.f32.mrf.mxu0
  %v756 = vadd.f32 %v532, %v755
  %v757 = vpop.f32.mrf.mxu0
  %758 = vmatprep.mubr.f32.mxu0 0.0
  %759 = vmatmul.mubr.f32.gmra.mxu0 %v374
  %v760 = vpop.f32.mrf.mxu0
  %v761 = vadd.f32 %v537, %v760
  %v762 = vpop.f32.mrf.mxu0
  %763 = vmatprep.mubr.f32.mxu0 0.0
  %764 = vmatmul.mubr.f32.gmra.mxu0 %v375
  %v765 = vpop.f32.mrf.mxu0
  %v766 = vadd.f32 %v542, %v765
  %v767 = vpop.f32.mrf.mxu0
  %768 = vmatprep.mubr.f32.mxu0 0.0
  %769 = vmatmul.mubr.f32.gmra.mxu0 %v376
  %v770 = vpop.f32.mrf.mxu0
  %v771 = vadd.f32 %v547, %v770
  %v772 = vpop.f32.mrf.mxu0
  %773 = vmatprep.mubr.f32.mxu0 0.0
  %774 = vmatmul.mubr.f32.gmra.mxu0 %v377
  %v775 = vpop.f32.mrf.mxu0
  %v776 = vadd.f32 %v552, %v775
  %v777 = vpop.f32.mrf.mxu0
  %778 = vmatprep.mubr.f32.mxu0 0.0
  %779 = vmatmul.mubr.f32.gmra.mxu0 %v378
  %v780 = vpop.f32.mrf.mxu0
  %v781 = vadd.f32 %v557, %v780
  %v782 = vpop.f32.mrf.mxu0
  %783 = vmatprep.mubr.f32.mxu0 0.0
  %784 = vmatmul.mubr.f32.gmra.mxu0 %v379
  %v785 = vpop.f32.mrf.mxu0
  %v786 = vadd.f32 %v562, %v785
  %v787 = vpop.f32.mrf.mxu0
  %788 = vmatprep.mubr.f32.mxu0 0.0
  %789 = vmatmul.mubr.f32.gmra.mxu0 %v380
  %v790 = vpop.f32.mrf.mxu0
  %v791 = vadd.f32 %v567, %v790
  %v792 = vpop.f32.mrf.mxu0
  %793 = vmatprep.mubr.f32.mxu0 0.0
  %794 = vmatmul.mubr.f32.gmra.mxu0 %v381
  %v795 = vpop.f32.mrf.mxu0
  %v796 = vadd.f32 %v572, %v795
  %v797 = vpop.f32.mrf.mxu0
  %798 = vdwg.mxu0
  %v799 = vmax.f32 %v641, 0.0
  %v800 = vmax.f32 %v646, 0.0
  %v801 = vmax.f32 %v651, 0.0
  %v802 = vmax.f32 %v656, 0.0
  %v803 = vmax.f32 %v661, 0.0
  %v804 = vmax.f32 %v666, 0.0
  %v805 = vmax.f32 %v671, 0.0
  %v806 = vmax.f32 %v676, 0.0
  %v807 = vmax.f32 %v681, 0.0
  %v808 = vmax.f32 %v686, 0.0
  %v809 = vmax.f32 %v691, 0.0
  %v810 = vmax.f32 %v696, 0.0
  %v811 = vmax.f32 %v701, 0.0
  %v812 = vmax.f32 %v706, 0.0
  %v813 = vmax.f32 %v711, 0.0
  %v814 = vmax.f32 %v716, 0.0
  %v815 = vmax.f32 %v721, 0.0
  %v816 = vmax.f32 %v726, 0.0
  %v817 = vmax.f32 %v731, 0.0
  %v818 = vmax.f32 %v736, 0.0
  %v819 = vmax.f32 %v741, 0.0
  %v820 = vmax.f32 %v746, 0.0
  %v821 = vmax.f32 %v751, 0.0
  %v822 = vmax.f32 %v756, 0.0
  %v823 = vmax.f32 %v761, 0.0
  %v824 = vmax.f32 %v766, 0.0
  %v825 = vmax.f32 %v771, 0.0
  %v826 = vmax.f32 %v776, 0.0
  %v827 = vmax.f32 %v781, 0.0
  %v828 = vmax.f32 %v786, 0.0
  %v829 = vmax.f32 %v791, 0.0
  %v830 = vmax.f32 %v796, 0.0
  %v831 = vmax.f32 %v799, %v801
  %v832 = vmax.f32 %v800, %v802
  %v833 = vmax.f32 %v831, %v803
  %v834 = vmax.f32 %v832, %v804
  %v835 = vmax.f32 %v833, %v805
  %v836 = vmax.f32 %v834, %v806
  %v837 = vmax.f32 %v835, %v807
  %v838 = vmax.f32 %v836, %v808
  %v839 = vmax.f32 %v837, %v809
  %v840 = vmax.f32 %v838, %v810
  %v841 = vmax.f32 %v839, %v811
  %v842 = vmax.f32 %v840, %v812
  %v843 = vmax.f32 %v841, %v813
  %v844 = vmax.f32 %v842, %v814
  %v845 = vmax.f32 %v843, %v815
  %v846 = vmax.f32 %v844, %v816
  %v847 = vmax.f32 %v845, %v817
  %v848 = vmax.f32 %v846, %v818
  %v849 = vmax.f32 %v847, %v819
  %v850 = vmax.f32 %v848, %v820
  %v851 = vmax.f32 %v849, %v821
  %v852 = vmax.f32 %v850, %v822
  %v853 = vmax.f32 %v851, %v823
  %v854 = vmax.f32 %v852, %v824
  %v855 = vmax.f32 %v853, %v825
  %v856 = vmax.f32 %v854, %v826
  %v857 = vmax.f32 %v855, %v827
  %v858 = vmax.f32 %v856, %v828
  %v859 = vmax.f32 %v857, %v829
  %v860 = vmax.f32 %v858, %v830
  %861 = vst [vmem:[%s5] sm:$0xff] %v859
  %862 = vst [vmem:[%s5 + $0x8] sm:$0xff] %v860
  // Predicated region
  $region22: #{set_abstraction_forward.4} parent=0 // pred_check
    _
  $region23: #{set_abstraction_forward.4} parent=0 // pred_check_branch
    %864 = sbr.rel (0) target = $region25
  $region24: #{set_abstraction_forward.4} parent=0 // pred_region
    _
  $region25: #{set_abstraction_forward.4} parent=0 // pred_fallthru
    _
  // Predicated region
  $region26: #{set_abstraction_forward.4} parent=0 // pred_check
    _
  $region27: #{set_abstraction_forward.4} parent=0 // pred_check_branch
    %866 = sbr.rel (0) target = $region29
  $region28: #{set_abstraction_forward.4} parent=0 // pred_region
    _
  $region29: #{set_abstraction_forward.4} parent=0 // pred_fallthru
    _

// kernel: set_abstraction_forward.5
$region0: #{set_abstraction_forward.5}
  #allocation0 [shape = 'u32[]', space=smem, size = 0x4, offset = 0x4, fixed_abs, tag = 'smem constant byte address 0x4 - core index']
  #allocation1 [shape = 'u32[144,128]{1,0:T(1,128)}', space=vmem, size = 0x12000, scoped, tag = 'internal scratch']
  %s0 = inlined_call_operand.vmem [shape: f32[280,128], index: 0, kind: input, shape index: {}]
  %s1 = inlined_call_operand.vmem [shape: f32[256,280], index: 1, kind: input, shape index: {}]
  %s2 = inlined_call_operand.vmem [shape: f32[256,1], index: 2, kind: input, shape index: {}]
  %s3 = inlined_call_operand.vmem [shape: f32[32,128], index: 3, kind: output, shape index: {}]
  %s4 = sld [smem:[#allocation0]]
  $region22: #{set_abstraction_forward.5} parent=0
    _
  %s6 = ssub.s32 1, %s4
  %s7 = scalar_select 0, %s6, %s4
  // Predicated region
  $region2: #{set_abstraction_forward.5} parent=0 // pred_check
    _
  $region3: #{set_abstraction_forward.5} parent=0 // pred_check_branch
    %9 = sbr.rel (0) target = $region5
  $region4: #{set_abstraction_forward.5} parent=0 // pred_region
    _
  $region5: #{set_abstraction_forward.5} parent=0 // pred_fallthru
    _
  // Predicated region
  $region6: #{set_abstraction_forward.5} parent=0 // pred_check
    _
  $region7: #{set_abstraction_forward.5} parent=0 // pred_check_branch
    %11 = sbr.rel (0) target = $region9
  $region8: #{set_abstraction_forward.5} parent=0 // pred_region
    _
  $region9: #{set_abstraction_forward.5} parent=0 // pred_fallthru
    _
  // Predicated region
  $region10: #{set_abstraction_forward.5} parent=0 // pred_check
    _
  $region11: #{set_abstraction_forward.5} parent=0 // pred_check_branch
    %13 = sbr.rel (0) target = $region13
  $region12: #{set_abstraction_forward.5} parent=0 // pred_region
    _
  $region13: #{set_abstraction_forward.5} parent=0 // pred_fallthru
    _
  %v14 = vld [vmem:[%s0] sm:$0xff]
  %v15 = vld [vmem:[%s0 + $0x8] sm:$0xff]
  %v16 = vld [vmem:[%s0 + $0x10] sm:$0xff]
  %v17 = vld [vmem:[%s0 + $0x18] sm:$0xff]
  %v18 = vld [vmem:[%s0 + $0x20] sm:$0xff]
  %v19 = vld [vmem:[%s0 + $0x28] sm:$0xff]
  %v20 = vld [vmem:[%s0 + $0x30] sm:$0xff]
  %v21 = vld [vmem:[%s0 + $0x38] sm:$0xff]
  %v22 = vld [vmem:[%s0 + $0x40] sm:$0xff]
  %v23 = vld [vmem:[%s0 + $0x48] sm:$0xff]
  %v24 = vld [vmem:[%s0 + $0x50] sm:$0xff]
  %v25 = vld [vmem:[%s0 + $0x58] sm:$0xff]
  %v26 = vld [vmem:[%s0 + $0x60] sm:$0xff]
  %v27 = vld [vmem:[%s0 + $0x68] sm:$0xff]
  %v28 = vld [vmem:[%s0 + $0x70] sm:$0xff]
  %v29 = vld [vmem:[%s0 + $0x78] sm:$0xff]
  %v30 = vld [vmem:[%s0 + $0x80] sm:$0xff]
  %v31 = vld [vmem:[%s0 + $0x88] sm:$0xff]
  %v32 = vld [vmem:[%s0 + $0x90] sm:$0xff]
  %v33 = vld [vmem:[%s0 + $0x98] sm:$0xff]
  %v34 = vld [vmem:[%s0 + $0xa0] sm:$0xff]
  %v35 = vld [vmem:[%s0 + $0xa8] sm:$0xff]
  %v36 = vld [vmem:[%s0 + $0xb0] sm:$0xff]
  %v37 = vld [vmem:[%s0 + $0xb8] sm:$0xff]
  %v38 = vld [vmem:[%s0 + $0xc0] sm:$0xff]
  %v39 = vld [vmem:[%s0 + $0xc8] sm:$0xff]
  %v40 = vld [vmem:[%s0 + $0xd0] sm:$0xff]
  %v41 = vld [vmem:[%s0 + $0xd8] sm:$0xff]
  %v42 = vld [vmem:[%s0 + $0xe0] sm:$0xff]
  %v43 = vld [vmem:[%s0 + $0xe8] sm:$0xff]
  %v44 = vld [vmem:[%s0 + $0xf0] sm:$0xff]
  %v45 = vld [vmem:[%s0 + $0xf8] sm:$0xff]
  %v46 = vld [vmem:[%s0 + $0x100] sm:$0xff]
  %v47 = vld [vmem:[%s0 + $0x108] sm:$0xff]
  %v48 = vld [vmem:[%s0 + $0x110] sm:$0xff]
  %v49 = vld [vmem:[%s1] sm:$0xff]
  %v50 = vld [vmem:[%s1 + $0x8] sm:$0xff]
  %v51 = vld [vmem:[%s1 + $0x10] sm:$0xff]
  %v52 = vld [vmem:[%s1 + $0x18] sm:$0xff]
  %v53 = vld [vmem:[%s1 + $0x20] sm:$0xff]
  %v54 = vld [vmem:[%s1 + $0x28] sm:$0xff]
  %v55 = vld [vmem:[%s1 + $0x30] sm:$0xff]
  %v56 = vld [vmem:[%s1 + $0x38] sm:$0xff]
  %v57 = vld [vmem:[%s1 + $0x40] sm:$0xff]
  %v58 = vld [vmem:[%s1 + $0x48] sm:$0xff]
  %v59 = vld [vmem:[%s1 + $0x50] sm:$0xff]
  %v60 = vld [vmem:[%s1 + $0x58] sm:$0xff]
  %v61 = vld [vmem:[%s1 + $0x60] sm:$0xff]
  %v62 = vld [vmem:[%s1 + $0x68] sm:$0xff]
  %v63 = vld [vmem:[%s1 + $0x70] sm:$0xff]
  %v64 = vld [vmem:[%s1 + $0x78] sm:$0xff]
  %v65 = vld [vmem:[%s1 + $0x80] sm:$0xff]
  %v66 = vld [vmem:[%s1 + $0x88] sm:$0xff]
  %v67 = vld [vmem:[%s1 + $0x90] sm:$0xff]
  %v68 = vld [vmem:[%s1 + $0x98] sm:$0xff]
  %v69 = vld [vmem:[%s1 + $0xa0] sm:$0xff]
  %v70 = vld [vmem:[%s1 + $0xa8] sm:$0xff]
  %v71 = vld [vmem:[%s1 + $0xb0] sm:$0xff]
  %v72 = vld [vmem:[%s1 + $0xb8] sm:$0xff]
  %v73 = vld [vmem:[%s1 + $0xc0] sm:$0xff]
  %v74 = vld [vmem:[%s1 + $0xc8] sm:$0xff]
  %v75 = vld [vmem:[%s1 + $0xd0] sm:$0xff]
  %v76 = vld [vmem:[%s1 + $0xd8] sm:$0xff]
  %v77 = vld [vmem:[%s1 + $0xe0] sm:$0xff]
  %v78 = vld [vmem:[%s1 + $0xe8] sm:$0xff]
  %v79 = vld [vmem:[%s1 + $0xf0] sm:$0xff]
  %v80 = vld [vmem:[%s1 + $0xf8] sm:$0xff]
  %v81 = vld [vmem:[%s1 + $0x100] sm:$0xff]
  %v82 = vld [vmem:[%s1 + $0x108] sm:$0xff]
  %v83 = vld [vmem:[%s1 + $0x110] sm:$0xff]
  %v84 = vld [vmem:[%s1 + $0x118] sm:$0xff]
  %v85 = vld [vmem:[%s1 + $0x120] sm:$0xff]
  %v86 = vld [vmem:[%s1 + $0x128] sm:$0xff]
  %v87 = vld [vmem:[%s1 + $0x130] sm:$0xff]
  %v88 = vld [vmem:[%s1 + $0x138] sm:$0xff]
  %v89 = vld [vmem:[%s1 + $0x140] sm:$0xff]
  %v90 = vld [vmem:[%s1 + $0x148] sm:$0xff]
  %v91 = vld [vmem:[%s1 + $0x150] sm:$0xff]
  %v92 = vld [vmem:[%s1 + $0x158] sm:$0xff]
  %v93 = vld [vmem:[%s1 + $0x160] sm:$0xff]
  %v94 = vld [vmem:[%s1 + $0x168] sm:$0xff]
  %v95 = vld [vmem:[%s1 + $0x170] sm:$0xff]
  %v96 = vld [vmem:[%s1 + $0x178] sm:$0xff]
  %v97 = vld [vmem:[%s1 + $0x180] sm:$0xff]
  %v98 = vld [vmem:[%s1 + $0x188] sm:$0xff]
  %v99 = vld [vmem:[%s1 + $0x190] sm:$0xff]
  %v100 = vld [vmem:[%s1 + $0x198] sm:$0xff]
  %v101 = vld [vmem:[%s1 + $0x1a0] sm:$0xff]
  %v102 = vld [vmem:[%s1 + $0x1a8] sm:$0xff]
  %v103 = vld [vmem:[%s1 + $0x1b0] sm:$0xff]
  %v104 = vld [vmem:[%s1 + $0x1b8] sm:$0xff]
  %v105 = vld [vmem:[%s1 + $0x1c0] sm:$0xff]
  %v106 = vld [vmem:[%s1 + $0x1c8] sm:$0xff]
  %v107 = vld [vmem:[%s1 + $0x1d0] sm:$0xff]
  %v108 = vld [vmem:[%s1 + $0x1d8] sm:$0xff]
  %v109 = vld [vmem:[%s1 + $0x1e0] sm:$0xff]
  %v110 = vld [vmem:[%s1 + $0x1e8] sm:$0xff]
  %v111 = vld [vmem:[%s1 + $0x1f0] sm:$0xff]
  %v112 = vld [vmem:[%s1 + $0x1f8] sm:$0xff]
  %v113 = vld [vmem:[%s1 + $0x200] sm:$0xff]
  %v114 = vld [vmem:[%s1 + $0x208] sm:$0xff]
  %v115 = vld [vmem:[%s1 + $0x210] sm:$0xff]
  %v116 = vld [vmem:[%s1 + $0x218] sm:$0xff]
  %v117 = vld [vmem:[%s1 + $0x220] sm:$0xff]
  %v118 = vld [vmem:[%s1 + $0x228] sm:$0xff]
  %v119 = vld [vmem:[%s1 + $0x230] sm:$0xff]
  %v120 = vld [vmem:[%s1 + $0x238] sm:$0xff]
  %v121 = vld [vmem:[%s1 + $0x240] sm:$0xff]
  %v122 = vld [vmem:[%s1 + $0x248] sm:$0xff]
  %v123 = vld [vmem:[%s1 + $0x250] sm:$0xff]
  %v124 = vld [vmem:[%s1 + $0x258] sm:$0xff]
  %v125 = vld [vmem:[%s1 + $0x260] sm:$0xff]
  %v126 = vld [vmem:[%s1 + $0x268] sm:$0xff]
  %v127 = vld [vmem:[%s1 + $0x270] sm:$0xff]
  %v128 = vld [vmem:[%s1 + $0x278] sm:$0xff]
  %v129 = vld [vmem:[%s1 + $0x280] sm:$0xff]
  %v130 = vld [vmem:[%s1 + $0x288] sm:$0xff]
  %v131 = vld [vmem:[%s1 + $0x290] sm:$0xff]
  %v132 = vld [vmem:[%s1 + $0x298] sm:$0xff]
  %v133 = vld [vmem:[%s1 + $0x2a0] sm:$0xff]
  %v134 = vld [vmem:[%s1 + $0x2a8] sm:$0xff]
  %v135 = vld [vmem:[%s1 + $0x2b0] sm:$0xff]
  %v136 = vld [vmem:[%s1 + $0x2b8] sm:$0xff]
  %v137 = vld [vmem:[%s1 + $0x2c0] sm:$0xff]
  %v138 = vld [vmem:[%s1 + $0x2c8] sm:$0xff]
  %v139 = vld [vmem:[%s1 + $0x2d0] sm:$0xff]
  %v140 = vld [vmem:[%s1 + $0x2d8] sm:$0xff]
  %v141 = vld [vmem:[%s1 + $0x2e0] sm:$0xff]
  %v142 = vld [vmem:[%s1 + $0x2e8] sm:$0xff]
  %v143 = vld [vmem:[%s1 + $0x2f0] sm:$0xff]
  %v144 = vld [vmem:[%s1 + $0x2f8] sm:$0xff]
  %v145 = vld [vmem:[%s2] sm:$0xff]
  %v146 = vld [vmem:[%s2 + $0x8] sm:$0xff]
  %v147 = vld [vmem:[%s2 + $0x10] sm:$0xff]
  %v148 = vld [vmem:[%s2 + $0x18] sm:$0xff]
  %v149 = vld [vmem:[%s2 + $0x20] sm:$0xff]
  %v150 = vld [vmem:[%s2 + $0x28] sm:$0xff]
  %v151 = vld [vmem:[%s2 + $0x30] sm:$0xff]
  %v152 = vld [vmem:[%s2 + $0x38] sm:$0xff]
  %v153 = vld [vmem:[%s2 + $0x40] sm:$0xff]
  %v154 = vld [vmem:[%s2 + $0x48] sm:$0xff]
  %v155 = vld [vmem:[%s2 + $0x50] sm:$0xff]
  %v156 = vld [vmem:[%s2 + $0x58] sm:$0xff]
  %v157 = vld [vmem:[%s2 + $0x60] sm:$0xff]
  %v158 = vld [vmem:[%s2 + $0x68] sm:$0xff]
  %v159 = vld [vmem:[%s2 + $0x70] sm:$0xff]
  %v160 = vld [vmem:[%s2 + $0x78] sm:$0xff]
  %v161 = vld [vmem:[%s2 + $0x80] sm:$0xff]
  %v162 = vld [vmem:[%s2 + $0x88] sm:$0xff]
  %v163 = vld [vmem:[%s2 + $0x90] sm:$0xff]
  %v164 = vld [vmem:[%s2 + $0x98] sm:$0xff]
  %v165 = vld [vmem:[%s2 + $0xa0] sm:$0xff]
  %v166 = vld [vmem:[%s2 + $0xa8] sm:$0xff]
  %v167 = vld [vmem:[%s2 + $0xb0] sm:$0xff]
  %v168 = vld [vmem:[%s2 + $0xb8] sm:$0xff]
  %v169 = vld [vmem:[%s2 + $0xc0] sm:$0xff]
  %v170 = vld [vmem:[%s2 + $0xc8] sm:$0xff]
  %v171 = vld [vmem:[%s2 + $0xd0] sm:$0xff]
  %v172 = vld [vmem:[%s2 + $0xd8] sm:$0xff]
  %v173 = vld [vmem:[%s2 + $0xe0] sm:$0xff]
  %v174 = vld [vmem:[%s2 + $0xe8] sm:$0xff]
  %v175 = vld [vmem:[%s2 + $0xf0] sm:$0xff]
  %v176 = vld [vmem:[%s2 + $0xf8] sm:$0xff]
  %178 = vset.pattern.permute.xlu0 0
  %179 = vperm.xlu0 %178, %v145
  %v180 = vpop.permute.xlu0 %179
  %183 = vset.pattern.permute.xlu0 0
  %184 = vperm.xlu0 %183, %v146
  %v185 = vpop.permute.xlu0 %184
  %188 = vset.pattern.permute.xlu0 0
  %189 = vperm.xlu0 %188, %v147
  %v190 = vpop.permute.xlu0 %189
  %193 = vset.pattern.permute.xlu0 0
  %194 = vperm.xlu0 %193, %v148
  %v195 = vpop.permute.xlu0 %194
  %198 = vset.pattern.permute.xlu0 0
  %199 = vperm.xlu0 %198, %v149
  %v200 = vpop.permute.xlu0 %199
  %203 = vset.pattern.permute.xlu0 0
  %204 = vperm.xlu0 %203, %v150
  %v205 = vpop.permute.xlu0 %204
  %208 = vset.pattern.permute.xlu0 0
  %209 = vperm.xlu0 %208, %v151
  %v210 = vpop.permute.xlu0 %209
  %213 = vset.pattern.permute.xlu0 0
  %214 = vperm.xlu0 %213, %v152
  %v215 = vpop.permute.xlu0 %214
  %218 = vset.pattern.permute.xlu0 0
  %219 = vperm.xlu0 %218, %v153
  %v220 = vpop.permute.xlu0 %219
  %223 = vset.pattern.permute.xlu0 0
  %224 = vperm.xlu0 %223, %v154
  %v225 = vpop.permute.xlu0 %224
  %228 = vset.pattern.permute.xlu0 0
  %229 = vperm.xlu0 %228, %v155
  %v230 = vpop.permute.xlu0 %229
  %233 = vset.pattern.permute.xlu0 0
  %234 = vperm.xlu0 %233, %v156
  %v235 = vpop.permute.xlu0 %234
  %238 = vset.pattern.permute.xlu0 0
  %239 = vperm.xlu0 %238, %v157
  %v240 = vpop.permute.xlu0 %239
  %243 = vset.pattern.permute.xlu0 0
  %244 = vperm.xlu0 %243, %v158
  %v245 = vpop.permute.xlu0 %244
  %248 = vset.pattern.permute.xlu0 0
  %249 = vperm.xlu0 %248, %v159
  %v250 = vpop.permute.xlu0 %249
  %253 = vset.pattern.permute.xlu0 0
  %254 = vperm.xlu0 %253, %v160
  %v255 = vpop.permute.xlu0 %254
  %258 = vset.pattern.permute.xlu0 0
  %259 = vperm.xlu0 %258, %v161
  %v260 = vpop.permute.xlu0 %259
  %263 = vset.pattern.permute.xlu0 0
  %264 = vperm.xlu0 %263, %v162
  %v265 = vpop.permute.xlu0 %264
  %268 = vset.pattern.permute.xlu0 0
  %269 = vperm.xlu0 %268, %v163
  %v270 = vpop.permute.xlu0 %269
  %273 = vset.pattern.permute.xlu0 0
  %274 = vperm.xlu0 %273, %v164
  %v275 = vpop.permute.xlu0 %274
  %278 = vset.pattern.permute.xlu0 0
  %279 = vperm.xlu0 %278, %v165
  %v280 = vpop.permute.xlu0 %279
  %283 = vset.pattern.permute.xlu0 0
  %284 = vperm.xlu0 %283, %v166
  %v285 = vpop.permute.xlu0 %284
  %288 = vset.pattern.permute.xlu0 0
  %289 = vperm.xlu0 %288, %v167
  %v290 = vpop.permute.xlu0 %289
  %293 = vset.pattern.permute.xlu0 0
  %294 = vperm.xlu0 %293, %v168
  %v295 = vpop.permute.xlu0 %294
  %298 = vset.pattern.permute.xlu0 0
  %299 = vperm.xlu0 %298, %v169
  %v300 = vpop.permute.xlu0 %299
  %303 = vset.pattern.permute.xlu0 0
  %304 = vperm.xlu0 %303, %v170
  %v305 = vpop.permute.xlu0 %304
  %308 = vset.pattern.permute.xlu0 0
  %309 = vperm.xlu0 %308, %v171
  %v310 = vpop.permute.xlu0 %309
  %313 = vset.pattern.permute.xlu0 0
  %314 = vperm.xlu0 %313, %v172
  %v315 = vpop.permute.xlu0 %314
  %318 = vset.pattern.permute.xlu0 0
  %319 = vperm.xlu0 %318, %v173
  %v320 = vpop.permute.xlu0 %319
  %323 = vset.pattern.permute.xlu0 0
  %324 = vperm.xlu0 %323, %v174
  %v325 = vpop.permute.xlu0 %324
  %328 = vset.pattern.permute.xlu0 0
  %329 = vperm.xlu0 %328, %v175
  %v330 = vpop.permute.xlu0 %329
  %333 = vset.pattern.permute.xlu0 0
  %334 = vperm.xlu0 %333, %v176
  %v335 = vpop.permute.xlu0 %334
  %vm337 = vcmask 195584
  %v339 = vsel %vm337, %v51, 0
  %v342 = vsel %vm337, %v54, 0
  %v345 = vsel %vm337, %v57, 0
  %v348 = vsel %vm337, %v60, 0
  %v351 = vsel %vm337, %v63, 0
  %v354 = vsel %vm337, %v66, 0
  %v357 = vsel %vm337, %v69, 0
  %v360 = vsel %vm337, %v72, 0
  %v363 = vsel %vm337, %v75, 0
  %v366 = vsel %vm337, %v78, 0
  %v369 = vsel %vm337, %v81, 0
  %v372 = vsel %vm337, %v84, 0
  %v375 = vsel %vm337, %v87, 0
  %v378 = vsel %vm337, %v90, 0
  %v381 = vsel %vm337, %v93, 0
  %v384 = vsel %vm337, %v96, 0
  %v387 = vsel %vm337, %v99, 0
  %v390 = vsel %vm337, %v102, 0
  %v393 = vsel %vm337, %v105, 0
  %v396 = vsel %vm337, %v108, 0
  %v399 = vsel %vm337, %v111, 0
  %v402 = vsel %vm337, %v114, 0
  %v405 = vsel %vm337, %v117, 0
  %v408 = vsel %vm337, %v120, 0
  %v411 = vsel %vm337, %v123, 0
  %v414 = vsel %vm337, %v126, 0
  %v417 = vsel %vm337, %v129, 0
  %v420 = vsel %vm337, %v132, 0
  %v423 = vsel %vm337, %v135, 0
  %v426 = vsel %vm337, %v138, 0
  %v429 = vsel %vm337, %v141, 0
  %v432 = vsel %vm337, %v144, 0
  %434 = vmatprep.subr.mxu0 0.0
  %435 = vmatpush1.msra.mxu0 %v29
  %436 = vmatprep.subr.mxu0 0.0
  %437 = vmatpush1.msra.mxu0 %v28
  %438 = vmatprep.subr.mxu0 0.0
  %439 = vmatpush1.msra.mxu0 %v27
  %440 = vmatprep.subr.mxu0 0.0
  %441 = vmatpush1.msra.mxu0 %v26
  %442 = vmatprep.subr.mxu0 0.0
  %443 = vmatpush1.msra.mxu0 %v25
  %444 = vmatprep.subr.mxu0 0.0
  %445 = vmatpush1.msra.mxu0 %v24
  %446 = vmatprep.subr.mxu0 0.0
  %447 = vmatpush1.msra.mxu0 %v23
  %448 = vmatprep.subr.mxu0 0.0
  %449 = vmatpush1.msra.mxu0 %v22
  %450 = vmatprep.subr.mxu0 0.0
  %451 = vmatpush1.msra.mxu0 %v21
  %452 = vmatprep.subr.mxu0 0.0
  %453 = vmatpush1.msra.mxu0 %v20
  %454 = vmatprep.subr.mxu0 0.0
  %455 = vmatpush1.msra.mxu0 %v19
  %456 = vmatprep.subr.mxu0 0.0
  %457 = vmatpush1.msra.mxu0 %v18
  %458 = vmatprep.subr.mxu0 0.0
  %459 = vmatpush1.msra.mxu0 %v17
  %460 = vmatprep.subr.mxu0 0.0
  %461 = vmatpush1.msra.mxu0 %v16
  %462 = vmatprep.subr.mxu0 0.0
  %463 = vmatpush1.msra.mxu0 %v15
  %464 = vmatprep.subr.mxu0 0.0
  %465 = vmatpush1.msra.mxu0 %v14
  %466 = vmatprep.subr.mxu0 0.0
  %467 = vmatpush2.msra.mxu0 %v45
  %468 = vmatprep.subr.mxu0 0.0
  %469 = vmatpush2.msra.mxu0 %v44
  %470 = vmatprep.subr.mxu0 0.0
  %471 = vmatpush2.msra.mxu0 %v43
  %472 = vmatprep.subr.mxu0 0.0
  %473 = vmatpush2.msra.mxu0 %v42
  %474 = vmatprep.subr.mxu0 0.0
  %475 = vmatpush2.msra.mxu0 %v41
  %476 = vmatprep.subr.mxu0 0.0
  %477 = vmatpush2.msra.mxu0 %v40
  %478 = vmatprep.subr.mxu0 0.0
  %479 = vmatpush2.msra.mxu0 %v39
  %480 = vmatprep.subr.mxu0 0.0
  %481 = vmatpush2.msra.mxu0 %v38
  %482 = vmatprep.subr.mxu0 0.0
  %483 = vmatpush2.msra.mxu0 %v37
  %484 = vmatprep.subr.mxu0 0.0
  %485 = vmatpush2.msra.mxu0 %v36
  %486 = vmatprep.subr.mxu0 0.0
  %487 = vmatpush2.msra.mxu0 %v35
  %488 = vmatprep.subr.mxu0 0.0
  %489 = vmatpush2.msra.mxu0 %v34
  %490 = vmatprep.subr.mxu0 0.0
  %491 = vmatpush2.msra.mxu0 %v33
  %492 = vmatprep.subr.mxu0 0.0
  %493 = vmatpush2.msra.mxu0 %v32
  %494 = vmatprep.subr.mxu0 0.0
  %495 = vmatpush2.msra.mxu0 %v31
  %496 = vmatprep.subr.mxu0 0.0
  %497 = vmatpush2.msra.mxu0 %v30
  %498 = vmatprep.mubr.f32.mxu0 %v50
  %499 = vmatmul.mubr.f32.gmra.mxu0 %v49
  %v500 = vpop.f32.mrf.mxu0
  %v501 = vadd.f32 %v180, %v500
  %v502 = vpop.f32.mrf.mxu0
  %503 = vmatprep.mubr.f32.mxu0 %v53
  %504 = vmatmul.mubr.f32.gmra.mxu0 %v52
  %v505 = vpop.f32.mrf.mxu0
  %v506 = vadd.f32 %v185, %v505
  %v507 = vpop.f32.mrf.mxu0
  %508 = vmatprep.mubr.f32.mxu0 %v56
  %509 = vmatmul.mubr.f32.gmra.mxu0 %v55
  %v510 = vpop.f32.mrf.mxu0
  %v511 = vadd.f32 %v190, %v510
  %v512 = vpop.f32.mrf.mxu0
  %513 = vmatprep.mubr.f32.mxu0 %v59
  %514 = vmatmul.mubr.f32.gmra.mxu0 %v58
  %v515 = vpop.f32.mrf.mxu0
  %v516 = vadd.f32 %v195, %v515
  %v517 = vpop.f32.mrf.mxu0
  %518 = vmatprep.mubr.f32.mxu0 %v62
  %519 = vmatmul.mubr.f32.gmra.mxu0 %v61
  %v520 = vpop.f32.mrf.mxu0
  %v521 = vadd.f32 %v200, %v520
  %v522 = vpop.f32.mrf.mxu0
  %523 = vmatprep.mubr.f32.mxu0 %v65
  %524 = vmatmul.mubr.f32.gmra.mxu0 %v64
  %v525 = vpop.f32.mrf.mxu0
  %v526 = vadd.f32 %v205, %v525
  %v527 = vpop.f32.mrf.mxu0
  %528 = vmatprep.mubr.f32.mxu0 %v68
  %529 = vmatmul.mubr.f32.gmra.mxu0 %v67
  %v530 = vpop.f32.mrf.mxu0
  %v531 = vadd.f32 %v210, %v530
  %v532 = vpop.f32.mrf.mxu0
  %533 = vmatprep.mubr.f32.mxu0 %v71
  %534 = vmatmul.mubr.f32.gmra.mxu0 %v70
  %v535 = vpop.f32.mrf.mxu0
  %v536 = vadd.f32 %v215, %v535
  %v537 = vpop.f32.mrf.mxu0
  %538 = vmatprep.mubr.f32.mxu0 %v74
  %539 = vmatmul.mubr.f32.gmra.mxu0 %v73
  %v540 = vpop.f32.mrf.mxu0
  %v541 = vadd.f32 %v220, %v540
  %v542 = vpop.f32.mrf.mxu0
  %543 = vmatprep.mubr.f32.mxu0 %v77
  %544 = vmatmul.mubr.f32.gmra.mxu0 %v76
  %v545 = vpop.f32.mrf.mxu0
  %v546 = vadd.f32 %v225, %v545
  %v547 = vpop.f32.mrf.mxu0
  %548 = vmatprep.mubr.f32.mxu0 %v80
  %549 = vmatmul.mubr.f32.gmra.mxu0 %v79
  %v550 = vpop.f32.mrf.mxu0
  %v551 = vadd.f32 %v230, %v550
  %v552 = vpop.f32.mrf.mxu0
  %553 = vmatprep.mubr.f32.mxu0 %v83
  %554 = vmatmul.mubr.f32.gmra.mxu0 %v82
  %v555 = vpop.f32.mrf.mxu0
  %v556 = vadd.f32 %v235, %v555
  %v557 = vpop.f32.mrf.mxu0
  %558 = vmatprep.mubr.f32.mxu0 %v86
  %559 = vmatmul.mubr.f32.gmra.mxu0 %v85
  %v560 = vpop.f32.mrf.mxu0
  %v561 = vadd.f32 %v240, %v560
  %v562 = vpop.f32.mrf.mxu0
  %563 = vmatprep.mubr.f32.mxu0 %v89
  %564 = vmatmul.mubr.f32.gmra.mxu0 %v88
  %v565 = vpop.f32.mrf.mxu0
  %v566 = vadd.f32 %v245, %v565
  %v567 = vpop.f32.mrf.mxu0
  %568 = vmatprep.mubr.f32.mxu0 %v92
  %569 = vmatmul.mubr.f32.gmra.mxu0 %v91
  %v570 = vpop.f32.mrf.mxu0
  %v571 = vadd.f32 %v250, %v570
  %v572 = vpop.f32.mrf.mxu0
  %573 = vmatprep.mubr.f32.mxu0 %v95
  %574 = vmatmul.mubr.f32.gmra.mxu0 %v94
  %v575 = vpop.f32.mrf.mxu0
  %v576 = vadd.f32 %v255, %v575
  %v577 = vpop.f32.mrf.mxu0
  %578 = vmatprep.mubr.f32.mxu0 %v98
  %579 = vmatmul.mubr.f32.gmra.mxu0 %v97
  %v580 = vpop.f32.mrf.mxu0
  %v581 = vadd.f32 %v260, %v580
  %v582 = vpop.f32.mrf.mxu0
  %583 = vmatprep.mubr.f32.mxu0 %v101
  %584 = vmatmul.mubr.f32.gmra.mxu0 %v100
  %v585 = vpop.f32.mrf.mxu0
  %v586 = vadd.f32 %v265, %v585
  %v587 = vpop.f32.mrf.mxu0
  %588 = vmatprep.mubr.f32.mxu0 %v104
  %589 = vmatmul.mubr.f32.gmra.mxu0 %v103
  %v590 = vpop.f32.mrf.mxu0
  %v591 = vadd.f32 %v270, %v590
  %v592 = vpop.f32.mrf.mxu0
  %593 = vmatprep.mubr.f32.mxu0 %v107
  %594 = vmatmul.mubr.f32.gmra.mxu0 %v106
  %v595 = vpop.f32.mrf.mxu0
  %v596 = vadd.f32 %v275, %v595
  %v597 = vpop.f32.mrf.mxu0
  %598 = vmatprep.mubr.f32.mxu0 %v110
  %599 = vmatmul.mubr.f32.gmra.mxu0 %v109
  %v600 = vpop.f32.mrf.mxu0
  %v601 = vadd.f32 %v280, %v600
  %v602 = vpop.f32.mrf.mxu0
  %603 = vmatprep.mubr.f32.mxu0 %v113
  %604 = vmatmul.mubr.f32.gmra.mxu0 %v112
  %v605 = vpop.f32.mrf.mxu0
  %v606 = vadd.f32 %v285, %v605
  %v607 = vpop.f32.mrf.mxu0
  %608 = vmatprep.mubr.f32.mxu0 %v116
  %609 = vmatmul.mubr.f32.gmra.mxu0 %v115
  %v610 = vpop.f32.mrf.mxu0
  %v611 = vadd.f32 %v290, %v610
  %v612 = vpop.f32.mrf.mxu0
  %613 = vmatprep.mubr.f32.mxu0 %v119
  %614 = vmatmul.mubr.f32.gmra.mxu0 %v118
  %v615 = vpop.f32.mrf.mxu0
  %v616 = vadd.f32 %v295, %v615
  %v617 = vpop.f32.mrf.mxu0
  %618 = vmatprep.mubr.f32.mxu0 %v122
  %619 = vmatmul.mubr.f32.gmra.mxu0 %v121
  %v620 = vpop.f32.mrf.mxu0
  %v621 = vadd.f32 %v300, %v620
  %v622 = vpop.f32.mrf.mxu0
  %623 = vmatprep.mubr.f32.mxu0 %v125
  %624 = vmatmul.mubr.f32.gmra.mxu0 %v124
  %v625 = vpop.f32.mrf.mxu0
  %v626 = vadd.f32 %v305, %v625
  %v627 = vpop.f32.mrf.mxu0
  %628 = vmatprep.mubr.f32.mxu0 %v128
  %629 = vmatmul.mubr.f32.gmra.mxu0 %v127
  %v630 = vpop.f32.mrf.mxu0
  %v631 = vadd.f32 %v310, %v630
  %v632 = vpop.f32.mrf.mxu0
  %633 = vmatprep.mubr.f32.mxu0 %v131
  %634 = vmatmul.mubr.f32.gmra.mxu0 %v130
  %v635 = vpop.f32.mrf.mxu0
  %v636 = vadd.f32 %v315, %v635
  %v637 = vpop.f32.mrf.mxu0
  %638 = vmatprep.mubr.f32.mxu0 %v134
  %639 = vmatmul.mubr.f32.gmra.mxu0 %v133
  %v640 = vpop.f32.mrf.mxu0
  %v641 = vadd.f32 %v320, %v640
  %v642 = vpop.f32.mrf.mxu0
  %643 = vmatprep.mubr.f32.mxu0 %v137
  %644 = vmatmul.mubr.f32.gmra.mxu0 %v136
  %v645 = vpop.f32.mrf.mxu0
  %v646 = vadd.f32 %v325, %v645
  %v647 = vpop.f32.mrf.mxu0
  %648 = vmatprep.mubr.f32.mxu0 %v140
  %649 = vmatmul.mubr.f32.gmra.mxu0 %v139
  %v650 = vpop.f32.mrf.mxu0
  %v651 = vadd.f32 %v330, %v650
  %v652 = vpop.f32.mrf.mxu0
  %653 = vmatprep.mubr.f32.mxu0 %v143
  %654 = vmatmul.mubr.f32.gmra.mxu0 %v142
  %v655 = vpop.f32.mrf.mxu0
  %v656 = vadd.f32 %v335, %v655
  %v657 = vpop.f32.mrf.mxu0
  %658 = vdwg.mxu0
  %659 = vmatprep.subr.mxu0 0.0
  %660 = vmatpush1.msra.mxu0 0.0
  %661 = vmatprep.subr.mxu0 0.0
  %662 = vmatpush1.msra.mxu0 0.0
  %663 = vmatprep.subr.mxu0 0.0
  %664 = vmatpush1.msra.mxu0 0.0
  %665 = vmatprep.subr.mxu0 0.0
  %666 = vmatpush1.msra.mxu0 0.0
  %667 = vmatprep.subr.mxu0 0.0
  %668 = vmatpush1.msra.mxu0 0.0
  %669 = vmatprep.subr.mxu0 0.0
  %670 = vmatpush1.msra.mxu0 0.0
  %671 = vmatprep.subr.mxu0 0.0
  %672 = vmatpush1.msra.mxu0 0.0
  %673 = vmatprep.subr.mxu0 0.0
  %674 = vmatpush1.msra.mxu0 0.0
  %675 = vmatprep.subr.mxu0 0.0
  %676 = vmatpush1.msra.mxu0 0.0
  %677 = vmatprep.subr.mxu0 0.0
  %678 = vmatpush1.msra.mxu0 0.0
  %679 = vmatprep.subr.mxu0 0.0
  %680 = vmatpush1.msra.mxu0 0.0
  %681 = vmatprep.subr.mxu0 0.0
  %682 = vmatpush1.msra.mxu0 0.0
  %683 = vmatprep.subr.mxu0 0.0
  %684 = vmatpush1.msra.mxu0 0.0
  %685 = vmatprep.subr.mxu0 0.0
  %686 = vmatpush1.msra.mxu0 %v48
  %687 = vmatprep.subr.mxu0 0.0
  %688 = vmatpush1.msra.mxu0 %v47
  %689 = vmatprep.subr.mxu0 0.0
  %690 = vmatpush1.msra.mxu0 %v46
  %691 = vmatprep.subr.mxu0 0.0
  %692 = vmatpush2.msra.mxu0 0.0
  %693 = vmatprep.subr.mxu0 0.0
  %694 = vmatpush2.msra.mxu0 0.0
  %695 = vmatprep.subr.mxu0 0.0
  %696 = vmatpush2.msra.mxu0 0.0
  %697 = vmatprep.subr.mxu0 0.0
  %698 = vmatpush2.msra.mxu0 0.0
  %699 = vmatprep.subr.mxu0 0.0
  %700 = vmatpush2.msra.mxu0 0.0
  %701 = vmatprep.subr.mxu0 0.0
  %702 = vmatpush2.msra.mxu0 0.0
  %703 = vmatprep.subr.mxu0 0.0
  %704 = vmatpush2.msra.mxu0 0.0
  %705 = vmatprep.subr.mxu0 0.0
  %706 = vmatpush2.msra.mxu0 0.0
  %707 = vmatprep.subr.mxu0 0.0
  %708 = vmatpush2.msra.mxu0 0.0
  %709 = vmatprep.subr.mxu0 0.0
  %710 = vmatpush2.msra.mxu0 0.0
  %711 = vmatprep.subr.mxu0 0.0
  %712 = vmatpush2.msra.mxu0 0.0
  %713 = vmatprep.subr.mxu0 0.0
  %714 = vmatpush2.msra.mxu0 0.0
  %715 = vmatprep.subr.mxu0 0.0
  %716 = vmatpush2.msra.mxu0 0.0
  %717 = vmatprep.subr.mxu0 0.0
  %718 = vmatpush2.msra.mxu0 0.0
  %719 = vmatprep.subr.mxu0 0.0
  %720 = vmatpush2.msra.mxu0 0.0
  %721 = vmatprep.subr.mxu0 0.0
  %722 = vmatpush2.msra.mxu0 0.0
  %723 = vmatprep.mubr.f32.mxu0 0.0
  %724 = vmatmul.mubr.f32.gmra.mxu0 %v339
  %v725 = vpop.f32.mrf.mxu0
  %v726 = vadd.f32 %v501, %v725
  %v727 = vpop.f32.mrf.mxu0
  %728 = vmatprep.mubr.f32.mxu0 0.0
  %729 = vmatmul.mubr.f32.gmra.mxu0 %v342
  %v730 = vpop.f32.mrf.mxu0
  %v731 = vadd.f32 %v506, %v730
  %v732 = vpop.f32.mrf.mxu0
  %733 = vmatprep.mubr.f32.mxu0 0.0
  %734 = vmatmul.mubr.f32.gmra.mxu0 %v345
  %v735 = vpop.f32.mrf.mxu0
  %v736 = vadd.f32 %v511, %v735
  %v737 = vpop.f32.mrf.mxu0
  %738 = vmatprep.mubr.f32.mxu0 0.0
  %739 = vmatmul.mubr.f32.gmra.mxu0 %v348
  %v740 = vpop.f32.mrf.mxu0
  %v741 = vadd.f32 %v516, %v740
  %v742 = vpop.f32.mrf.mxu0
  %743 = vmatprep.mubr.f32.mxu0 0.0
  %744 = vmatmul.mubr.f32.gmra.mxu0 %v351
  %v745 = vpop.f32.mrf.mxu0
  %v746 = vadd.f32 %v521, %v745
  %v747 = vpop.f32.mrf.mxu0
  %748 = vmatprep.mubr.f32.mxu0 0.0
  %749 = vmatmul.mubr.f32.gmra.mxu0 %v354
  %v750 = vpop.f32.mrf.mxu0
  %v751 = vadd.f32 %v526, %v750
  %v752 = vpop.f32.mrf.mxu0
  %753 = vmatprep.mubr.f32.mxu0 0.0
  %754 = vmatmul.mubr.f32.gmra.mxu0 %v357
  %v755 = vpop.f32.mrf.mxu0
  %v756 = vadd.f32 %v531, %v755
  %v757 = vpop.f32.mrf.mxu0
  %758 = vmatprep.mubr.f32.mxu0 0.0
  %759 = vmatmul.mubr.f32.gmra.mxu0 %v360
  %v760 = vpop.f32.mrf.mxu0
  %v761 = vadd.f32 %v536, %v760
  %v762 = vpop.f32.mrf.mxu0
  %763 = vmatprep.mubr.f32.mxu0 0.0
  %764 = vmatmul.mubr.f32.gmra.mxu0 %v363
  %v765 = vpop.f32.mrf.mxu0
  %v766 = vadd.f32 %v541, %v765
  %v767 = vpop.f32.mrf.mxu0
  %768 = vmatprep.mubr.f32.mxu0 0.0
  %769 = vmatmul.mubr.f32.gmra.mxu0 %v366
  %v770 = vpop.f32.mrf.mxu0
  %v771 = vadd.f32 %v546, %v770
  %v772 = vpop.f32.mrf.mxu0
  %773 = vmatprep.mubr.f32.mxu0 0.0
  %774 = vmatmul.mubr.f32.gmra.mxu0 %v369
  %v775 = vpop.f32.mrf.mxu0
  %v776 = vadd.f32 %v551, %v775
  %v777 = vpop.f32.mrf.mxu0
  %778 = vmatprep.mubr.f32.mxu0 0.0
  %779 = vmatmul.mubr.f32.gmra.mxu0 %v372
  %v780 = vpop.f32.mrf.mxu0
  %v781 = vadd.f32 %v556, %v780
  %v782 = vpop.f32.mrf.mxu0
  %783 = vmatprep.mubr.f32.mxu0 0.0
  %784 = vmatmul.mubr.f32.gmra.mxu0 %v375
  %v785 = vpop.f32.mrf.mxu0
  %v786 = vadd.f32 %v561, %v785
  %v787 = vpop.f32.mrf.mxu0
  %788 = vmatprep.mubr.f32.mxu0 0.0
  %789 = vmatmul.mubr.f32.gmra.mxu0 %v378
  %v790 = vpop.f32.mrf.mxu0
  %v791 = vadd.f32 %v566, %v790
  %v792 = vpop.f32.mrf.mxu0
  %793 = vmatprep.mubr.f32.mxu0 0.0
  %794 = vmatmul.mubr.f32.gmra.mxu0 %v381
  %v795 = vpop.f32.mrf.mxu0
  %v796 = vadd.f32 %v571, %v795
  %v797 = vpop.f32.mrf.mxu0
  %798 = vmatprep.mubr.f32.mxu0 0.0
  %799 = vmatmul.mubr.f32.gmra.mxu0 %v384
  %v800 = vpop.f32.mrf.mxu0
  %v801 = vadd.f32 %v576, %v800
  %v802 = vpop.f32.mrf.mxu0
  %803 = vmatprep.mubr.f32.mxu0 0.0
  %804 = vmatmul.mubr.f32.gmra.mxu0 %v387
  %v805 = vpop.f32.mrf.mxu0
  %v806 = vadd.f32 %v581, %v805
  %v807 = vpop.f32.mrf.mxu0
  %808 = vmatprep.mubr.f32.mxu0 0.0
  %809 = vmatmul.mubr.f32.gmra.mxu0 %v390
  %v810 = vpop.f32.mrf.mxu0
  %v811 = vadd.f32 %v586, %v810
  %v812 = vpop.f32.mrf.mxu0
  %813 = vmatprep.mubr.f32.mxu0 0.0
  %814 = vmatmul.mubr.f32.gmra.mxu0 %v393
  %v815 = vpop.f32.mrf.mxu0
  %v816 = vadd.f32 %v591, %v815
  %v817 = vpop.f32.mrf.mxu0
  %818 = vmatprep.mubr.f32.mxu0 0.0
  %819 = vmatmul.mubr.f32.gmra.mxu0 %v396
  %v820 = vpop.f32.mrf.mxu0
  %v821 = vadd.f32 %v596, %v820
  %v822 = vpop.f32.mrf.mxu0
  %823 = vmatprep.mubr.f32.mxu0 0.0
  %824 = vmatmul.mubr.f32.gmra.mxu0 %v399
  %v825 = vpop.f32.mrf.mxu0
  %v826 = vadd.f32 %v601, %v825
  %v827 = vpop.f32.mrf.mxu0
  %828 = vmatprep.mubr.f32.mxu0 0.0
  %829 = vmatmul.mubr.f32.gmra.mxu0 %v402
  %v830 = vpop.f32.mrf.mxu0
  %v831 = vadd.f32 %v606, %v830
  %v832 = vpop.f32.mrf.mxu0
  %833 = vmatprep.mubr.f32.mxu0 0.0
  %834 = vmatmul.mubr.f32.gmra.mxu0 %v405
  %v835 = vpop.f32.mrf.mxu0
  %v836 = vadd.f32 %v611, %v835
  %v837 = vpop.f32.mrf.mxu0
  %838 = vmatprep.mubr.f32.mxu0 0.0
  %839 = vmatmul.mubr.f32.gmra.mxu0 %v408
  %v840 = vpop.f32.mrf.mxu0
  %v841 = vadd.f32 %v616, %v840
  %v842 = vpop.f32.mrf.mxu0
  %843 = vmatprep.mubr.f32.mxu0 0.0
  %844 = vmatmul.mubr.f32.gmra.mxu0 %v411
  %v845 = vpop.f32.mrf.mxu0
  %v846 = vadd.f32 %v621, %v845
  %v847 = vpop.f32.mrf.mxu0
  %848 = vmatprep.mubr.f32.mxu0 0.0
  %849 = vmatmul.mubr.f32.gmra.mxu0 %v414
  %v850 = vpop.f32.mrf.mxu0
  %v851 = vadd.f32 %v626, %v850
  %v852 = vpop.f32.mrf.mxu0
  %853 = vmatprep.mubr.f32.mxu0 0.0
  %854 = vmatmul.mubr.f32.gmra.mxu0 %v417
  %v855 = vpop.f32.mrf.mxu0
  %v856 = vadd.f32 %v631, %v855
  %v857 = vpop.f32.mrf.mxu0
  %858 = vmatprep.mubr.f32.mxu0 0.0
  %859 = vmatmul.mubr.f32.gmra.mxu0 %v420
  %v860 = vpop.f32.mrf.mxu0
  %v861 = vadd.f32 %v636, %v860
  %v862 = vpop.f32.mrf.mxu0
  %863 = vmatprep.mubr.f32.mxu0 0.0
  %864 = vmatmul.mubr.f32.gmra.mxu0 %v423
  %v865 = vpop.f32.mrf.mxu0
  %v866 = vadd.f32 %v641, %v865
  %v867 = vpop.f32.mrf.mxu0
  %868 = vmatprep.mubr.f32.mxu0 0.0
  %869 = vmatmul.mubr.f32.gmra.mxu0 %v426
  %v870 = vpop.f32.mrf.mxu0
  %v871 = vadd.f32 %v646, %v870
  %v872 = vpop.f32.mrf.mxu0
  %873 = vmatprep.mubr.f32.mxu0 0.0
  %874 = vmatmul.mubr.f32.gmra.mxu0 %v429
  %v875 = vpop.f32.mrf.mxu0
  %v876 = vadd.f32 %v651, %v875
  %v877 = vpop.f32.mrf.mxu0
  %878 = vmatprep.mubr.f32.mxu0 0.0
  %879 = vmatmul.mubr.f32.gmra.mxu0 %v432
  %v880 = vpop.f32.mrf.mxu0
  %v881 = vadd.f32 %v656, %v880
  %v882 = vpop.f32.mrf.mxu0
  %883 = vdwg.mxu0
  %v884 = vmax.f32 %v726, 0.0
  %v885 = vmax.f32 %v731, 0.0
  %v886 = vmax.f32 %v736, 0.0
  %v887 = vmax.f32 %v741, 0.0
  %v888 = vmax.f32 %v746, 0.0
  %v889 = vmax.f32 %v751, 0.0
  %v890 = vmax.f32 %v756, 0.0
  %v891 = vmax.f32 %v761, 0.0
  %v892 = vmax.f32 %v766, 0.0
  %v893 = vmax.f32 %v771, 0.0
  %v894 = vmax.f32 %v776, 0.0
  %v895 = vmax.f32 %v781, 0.0
  %v896 = vmax.f32 %v786, 0.0
  %v897 = vmax.f32 %v791, 0.0
  %v898 = vmax.f32 %v796, 0.0
  %v899 = vmax.f32 %v801, 0.0
  %v900 = vmax.f32 %v806, 0.0
  %v901 = vmax.f32 %v811, 0.0
  %v902 = vmax.f32 %v816, 0.0
  %v903 = vmax.f32 %v821, 0.0
  %v904 = vmax.f32 %v826, 0.0
  %v905 = vmax.f32 %v831, 0.0
  %v906 = vmax.f32 %v836, 0.0
  %v907 = vmax.f32 %v841, 0.0
  %v908 = vmax.f32 %v846, 0.0
  %v909 = vmax.f32 %v851, 0.0
  %v910 = vmax.f32 %v856, 0.0
  %v911 = vmax.f32 %v861, 0.0
  %v912 = vmax.f32 %v866, 0.0
  %v913 = vmax.f32 %v871, 0.0
  %v914 = vmax.f32 %v876, 0.0
  %v915 = vmax.f32 %v881, 0.0
  %v916 = vmax.f32 %v884, %v888
  %v917 = vmax.f32 %v885, %v889
  %v918 = vmax.f32 %v886, %v890
  %v919 = vmax.f32 %v887, %v891
  %v920 = vmax.f32 %v916, %v892
  %v921 = vmax.f32 %v917, %v893
  %v922 = vmax.f32 %v918, %v894
  %v923 = vmax.f32 %v919, %v895
  %v924 = vmax.f32 %v920, %v896
  %v925 = vmax.f32 %v921, %v897
  %v926 = vmax.f32 %v922, %v898
  %v927 = vmax.f32 %v923, %v899
  %v928 = vmax.f32 %v924, %v900
  %v929 = vmax.f32 %v925, %v901
  %v930 = vmax.f32 %v926, %v902
  %v931 = vmax.f32 %v927, %v903
  %v932 = vmax.f32 %v928, %v904
  %v933 = vmax.f32 %v929, %v905
  %v934 = vmax.f32 %v930, %v906
  %v935 = vmax.f32 %v931, %v907
  %v936 = vmax.f32 %v932, %v908
  %v937 = vmax.f32 %v933, %v909
  %v938 = vmax.f32 %v934, %v910
  %v939 = vmax.f32 %v935, %v911
  %v940 = vmax.f32 %v936, %v912
  %v941 = vmax.f32 %v937, %v913
  %v942 = vmax.f32 %v938, %v914
  %v943 = vmax.f32 %v939, %v915
  %944 = vst [vmem:[%s3] sm:$0xff] %v940
  %945 = vst [vmem:[%s3 + $0x8] sm:$0xff] %v941
  %946 = vst [vmem:[%s3 + $0x10] sm:$0xff] %v942
  %947 = vst [vmem:[%s3 + $0x18] sm:$0xff] %v943
  // Predicated region
  $region14: #{set_abstraction_forward.5} parent=0 // pred_check
    _
  $region15: #{set_abstraction_forward.5} parent=0 // pred_check_branch
    %949 = sbr.rel (0) target = $region17
  $region16: #{set_abstraction_forward.5} parent=0 // pred_region
    _
  $region17: #{set_abstraction_forward.5} parent=0 // pred_fallthru
    _
  // Predicated region
  $region18: #{set_abstraction_forward.5} parent=0 // pred_check
    _
  $region19: #{set_abstraction_forward.5} parent=0 // pred_check_branch
    %951 = sbr.rel (0) target = $region21
  $region20: #{set_abstraction_forward.5} parent=0 // pred_region
    _
  $region21: #{set_abstraction_forward.5} parent=0 // pred_fallthru
    _

</llo_original>
